<compile_context>
chip_gen: v7x
topology: tpu7x:2x2x1
jax: 0.10.0
libtpu: 0.0.40
codegen_flags: <defaults>
</compile_context>

<pallas_src>
import functools
import math

import jax
import jax.numpy as jnp
from jax.experimental import pallas as pl
from jax.experimental.pallas import tpu as pltpu


def _mha_kernel(q_ref, k_ref, wq_ref, wk_ref, wv_ref, bq_ref, bk_ref, bv_ref,
                o_ref, kp_ref, vp_ref, kmask_ref, slab_ref,
                *, num_heads, hidden_size, compute_dtype):
    # q_ref: (1, tq, H) f32      k_ref: (1, Lk, H) f32
    # w*_ref: (H, U) compute_dtype, whole-array VMEM resident
    # b*_ref: (1, U) f32, whole-array VMEM resident (scale folded into bq)
    # o_ref: (1, tq, U) f32
    # kp_ref/vp_ref: (Lk, U) compute_dtype scratch  (K/V projections, per batch)
    # kmask_ref: (1, Lk) f32 scratch                (key-validity mask, per batch)
    # slab_ref: (tq, U) f32 scratch                 (per-head outputs + residual)
    cdt = compute_dtype
    d = hidden_size // num_heads
    neg = jnp.float32(-2.0 ** 32 + 1)

    q = q_ref[0]                                   # [tq, H] f32
    tq = q.shape[0]
    lk = k_ref.shape[1]

    # ---- per-batch work: K/V projections + key mask, only at the first Lq block
    @pl.when(pl.program_id(1) == 0)
    def _init():
        k = k_ref[0]                               # [Lk, H] f32
        k_mm = k.astype(cdt)
        kp = (jnp.dot(k_mm, wk_ref[...], preferred_element_type=jnp.float32)
              + bk_ref[...])
        vp = (jnp.dot(k_mm, wv_ref[...], preferred_element_type=jnp.float32)
              + bv_ref[...])
        kp_ref[...] = kp.astype(cdt)
        vp_ref[...] = vp.astype(cdt)
        kmask_ref[...] = jnp.transpose(
            (jnp.sum(k, axis=-1, keepdims=True) != 0.0).astype(jnp.float32))

    # ---- per-step work -------------------------------------------------------
    # Q projection; the 1/sqrt(hidden) softmax scale is folded into wq/bq.
    qp = (jnp.dot(q.astype(cdt), wq_ref[...], preferred_element_type=jnp.float32)
          + bq_ref[...]).astype(cdt)               # [tq, U]

    q_start = pl.program_id(1) * tq
    row = q_start + jax.lax.broadcasted_iota(jnp.int32, (tq, lk), 0)
    col = jax.lax.broadcasted_iota(jnp.int32, (tq, lk), 1)
    allowed = (col <= row) & (kmask_ref[...] != 0.0)            # [tq, Lk]
    query_mask = (jnp.sum(q, axis=-1, keepdims=True) != 0.0
                  ).astype(jnp.float32)                          # [tq, 1]

    contract_last = (((1,), (1,)), ((), ()))        # q . k^T without transpose
    for h in range(num_heads):                      # static, small head count
        lo = h * d
        qh = qp[:, lo:lo + d]                       # [tq, d]
        kh = kp_ref[:, lo:lo + d]                   # [Lk, d]
        vh = vp_ref[:, lo:lo + d]                   # [Lk, d]

        s = jax.lax.dot_general(qh, kh, dimension_numbers=contract_last,
                                preferred_element_type=jnp.float32)   # [tq, Lk]
        s = jnp.where(allowed, s, neg)              # key + causal mask, one select
        m = jnp.max(s, axis=-1, keepdims=True)
        e = jnp.exp(s - m)
        denom = jnp.sum(e, axis=-1, keepdims=True)                    # [tq, 1]
        # softmax linearity: normalize AFTER the [tq, d] PV matmul; the exact
        # reciprocal is fused with the query mask into a single [tq, 1] factor.
        oh = jnp.dot(e.astype(cdt), vh, preferred_element_type=jnp.float32)
        slab_ref[:, lo:lo + d] = oh * (query_mask / denom) + q[:, lo:lo + d]

    # Single lane-dense full-width store of (attention + residual).
    o_ref[0] = slab_ref[...].astype(o_ref.dtype)


def _round_up(x, m):
    return ((x + m - 1) // m) * m


def _vmem_capacity_bytes():
    try:
        return int(pltpu.get_tpu_info().vmem_capacity_bytes)
    except Exception:
        return 128 * 1024 * 1024   # v5e/v6e default; v7x reports 64 MiB


def _pick_q_block(lq, vmem_cap):
    # Generation-aware: 512 on 128 MiB parts (v5e/v6e), 256 on 64 MiB (v7x).
    target = 512 if vmem_cap >= (96 << 20) else 256
    return min(target, _round_up(lq, 8))


def multi_head_attention(queries, keys, params, *, num_heads, hidden_size,
                         compute_dtype=jnp.bfloat16):
    """Pallas forward of MultiHeadAttention (dropout = eval-mode identity)."""
    B, Lq, H = queries.shape
    _, Lk, _ = keys.shape
    assert H == hidden_size
    U = params["wq"].shape[0]
    assert U == hidden_size, "kernel assumes num_units == hidden_size"
    d = hidden_size // num_heads
    assert num_heads * d == hidden_size

    scale = 1.0 / math.sqrt(hidden_size)
    # Softmax scale folded weight-side (one-time transform, not a per-step mul).
    wq_t = (params["wq"].T * scale).astype(compute_dtype)   # [H, U]
    wk_t = params["wk"].T.astype(compute_dtype)
    wv_t = params["wv"].T.astype(compute_dtype)
    bq = (params["bq"] * scale).reshape(1, U).astype(jnp.float32)
    bk = params["bk"].reshape(1, U).astype(jnp.float32)
    bv = params["bv"].reshape(1, U).astype(jnp.float32)

    queries = queries.astype(jnp.float32)
    keys = keys.astype(jnp.float32)

    vmem_cap = _vmem_capacity_bytes()
    tq = _pick_q_block(Lq, vmem_cap)
    lq_pad = _round_up(Lq, tq)
    if lq_pad != Lq:
        # Padded (all-zero) query rows are neutral: query_mask zeroes their
        # attention and the residual is zero; they are sliced off below.
        queries_p = jnp.pad(queries, ((0, 0), (0, lq_pad - Lq), (0, 0)))
    else:
        queries_p = queries
    grid = (B, lq_pad // tq)

    c_item = jnp.dtype(compute_dtype).itemsize
    # Per-grid-step VMEM estimate (pipelined tiles double-buffered).
    est = (2 * tq * H * 4 + 2 * Lk * H * 4 + 2 * tq * U * 4       # q/k/out tiles
           + 3 * H * U * c_item + 3 * U * 4                       # resident weights
           + 2 * Lk * U * c_item + tq * U * 4 + 8 * Lk * 4        # scratch buffers
           + 6 * tq * Lk * 4)                                     # s/e temporaries
    vmem_limit = int(min(0.7 * vmem_cap, max(32 * 1024 * 1024, 2 * est)))

    vmem_full = pl.BlockSpec(memory_space=pltpu.MemorySpace.VMEM)

    kernel = functools.partial(
        _mha_kernel, num_heads=num_heads, hidden_size=hidden_size,
        compute_dtype=compute_dtype)

    cost = pl.CostEstimate(
        flops=int(2 * B * lq_pad * H * U                 # Q projection
                  + 4 * B * Lk * H * U                   # K/V projections, once/batch
                  + 4 * B * num_heads * lq_pad * Lk * d),
        transcendentals=int(B * num_heads * lq_pad * Lk),
        bytes_accessed=int(4 * (B * lq_pad * H + B * Lk * H + B * lq_pad * U + 3 * U)
                           + c_item * 3 * H * U),
    )

    out = pl.pallas_call(
        kernel,
        out_shape=jax.ShapeDtypeStruct((B, lq_pad, U), jnp.float32),
        grid=grid,
        in_specs=[
            pl.BlockSpec((1, tq, H), lambda b, i: (b, i, 0)),   # queries tile
            pl.BlockSpec((1, Lk, H), lambda b, i: (b, 0, 0)),   # keys (full Lk; block
                                                                # index fixed per batch)
            vmem_full, vmem_full, vmem_full,                    # Wq^T, Wk^T, Wv^T
            vmem_full, vmem_full, vmem_full,                    # bq, bk, bv
        ],
        out_specs=pl.BlockSpec((1, tq, U), lambda b, i: (b, i, 0)),
        scratch_shapes=[
            pltpu.VMEM((Lk, U), compute_dtype),    # K projection (reused over i)
            pltpu.VMEM((Lk, U), compute_dtype),    # V projection (reused over i)
            pltpu.VMEM((1, Lk), jnp.float32),      # key-validity mask
            pltpu.VMEM((tq, U), jnp.float32),      # per-head output slab
        ],
        compiler_params=pltpu.CompilerParams(
            # axis 1 carries kp/vp/kmask scratch across Lq blocks -> "arbitrary";
            # the batch axis stays "parallel" for megacore sharding.
            dimension_semantics=("parallel", "arbitrary"),
            vmem_limit_bytes=vmem_limit),
        cost_estimate=cost,
    )(queries_p, keys, wq_t, wk_t, wv_t, bq, bk, bv)

    return out[:, :Lq, :]


def _reference(queries, keys, params, *, num_heads, hidden_size):
    """Pure-JAX port of the PyTorch forward (dropout = identity), f32-exact."""
    hp = jax.lax.Precision.HIGHEST
    Q = jnp.dot(queries, params["wq"].T, precision=hp) + params["bq"]
    K = jnp.dot(keys, params["wk"].T, precision=hp) + params["bk"]
    V = jnp.dot(keys, params["wv"].T, precision=hp) + params["bv"]
    Q_ = jnp.concatenate(jnp.split(Q, num_heads, axis=2), axis=0)
    K_ = jnp.concatenate(jnp.split(K, num_heads, axis=2), axis=0)
    V_ = jnp.concatenate(jnp.split(V, num_heads, axis=2), axis=0)
    s = jnp.einsum("bqd,bkd->bqk", Q_, K_, precision=hp) / math.sqrt(hidden_size)
    neg = -2.0 ** 32 + 1
    key_mask = jnp.sign(jnp.abs(keys.sum(-1)))                 # [B, Lk]
    key_mask = jnp.tile(key_mask, (num_heads, 1))[:, None, :]  # [hB, 1, Lk]
    key_mask = jnp.broadcast_to(key_mask, s.shape)
    s = jnp.where(key_mask == 0, neg, s)
    tril = jnp.tril(jnp.ones_like(s[0]))
    s = jnp.where(jnp.broadcast_to(tril[None], s.shape) == 0, neg, s)
    p = jax.nn.softmax(s, axis=-1)
    qmask = jnp.sign(jnp.abs(queries.sum(-1)))                 # [B, Lq]
    qmask = jnp.tile(qmask, (num_heads, 1))[:, :, None]
    p = p * qmask
    out_ws = jnp.einsum("bqk,bkd->bqd", p, V_, precision=hp)
    out = jnp.concatenate(jnp.split(out_ws, num_heads, axis=0), axis=2)
    return out + queries


def _init_params(key, hidden_size, num_units):
    """Deterministic PyTorch-Linear-style init: U(-1/sqrt(in), 1/sqrt(in))."""
    bound = 1.0 / math.sqrt(hidden_size)
    ks = jax.random.split(key, 6)
    u = lambda k, shape: jax.random.uniform(
        k, shape, jnp.float32, minval=-bound, maxval=bound)
    return {
        "wq": u(ks[0], (num_units, hidden_size)),
        "bq": u(ks[1], (num_units,)),
        "wk": u(ks[2], (num_units, hidden_size)),
        "bk": u(ks[3], (num_units,)),
        "wv": u(ks[4], (num_units, hidden_size)),
        "bv": u(ks[5], (num_units,)),
    }


if __name__ == "__main__":
    B, L, HIDDEN, HEADS = 2, 8, 32, 4
    DROPOUT = 0.0  # eval-mode identity

    root = jax.random.PRNGKey(0)
    k_q, k_k, k_p = jax.random.split(root, 3)

    queries = jax.random.normal(k_q, (B, L, HIDDEN), jnp.float32)
    keys = jax.random.normal(k_k, (B, L, HIDDEN), jnp.float32)
    # Introduce padded (all-zero) positions to exercise the key/query masks.
    keys = keys.at[0, -1, :].set(0.0)
    queries = queries.at[1, -1, :].set(0.0)

    params = _init_params(k_p, HIDDEN, HIDDEN)
    ref = _reference(queries, keys, params, num_heads=HEADS, hidden_size=HIDDEN)

    # Correctness gate: f32 MXU operands -> near-exact parity with the
    # PyTorch-port reference (exact softmax reciprocal, HIGHEST-precision ref).
    out_f32 = multi_head_attention(queries, keys, params, num_heads=HEADS,
                                   hidden_size=HIDDEN, compute_dtype=jnp.float32)
    out_f32 = jax.block_until_ready(out_f32)
    assert out_f32.shape == (B, L, HIDDEN)
    assert jnp.allclose(out_f32, ref, rtol=2e-3, atol=2e-3), "f32 mismatch vs reference"

    # Perf path: bf16 MXU operands (native on v5e/v6e/v7x MXUs); softmax math
    # stays f32. Loose tolerance accounts only for bf16 operand rounding.
    out_bf16 = multi_head_attention(queries, keys, params, num_heads=HEADS,
                                    hidden_size=HIDDEN, compute_dtype=jnp.bfloat16)
    out_bf16 = jax.block_until_ready(out_bf16)
    assert out_bf16.shape == (B, L, HIDDEN)
    assert jnp.allclose(out_bf16, ref, rtol=1e-1, atol=1e-1), "bf16 sanity mismatch"

    print("KERNEL_OK")
</pallas_src>

<mosaic_0001>
module attributes {stable_mosaic.version = 11 : i64} {
  func.func @_mha_kernel(%arg0: i32, %arg1: i32, %arg2: memref<1x8x32xf32, #tpu.memory_space<vmem>>, %arg3: memref<1x8x32xf32, #tpu.memory_space<vmem>>, %arg4: memref<32x32xf32, #tpu.memory_space<vmem>>, %arg5: memref<32x32xf32, #tpu.memory_space<vmem>>, %arg6: memref<32x32xf32, #tpu.memory_space<vmem>>, %arg7: memref<1x32xf32, #tpu.memory_space<vmem>>, %arg8: memref<1x32xf32, #tpu.memory_space<vmem>>, %arg9: memref<1x32xf32, #tpu.memory_space<vmem>>, %arg10: memref<1x8x32xf32, #tpu.memory_space<vmem>>, %arg11: memref<8x32xf32, #tpu.memory_space<vmem>>, %arg12: memref<8x32xf32, #tpu.memory_space<vmem>>, %arg13: memref<1x8xf32, #tpu.memory_space<vmem>>, %arg14: memref<8x32xf32, #tpu.memory_space<vmem>>) attributes {dimension_semantics = [#tpu.dimension_semantics<parallel>, #tpu.dimension_semantics<arbitrary>], iteration_bounds = array<i64: 2, 1>, scalar_prefetch = 0 : i64, scratch_operands = 4 : i64, tpu.core_type = #tpu.core_type<tc>, window_params = [{transform_indices = @transform_0, window_bounds = array<i64: 1, 8, 32>}, {transform_indices = @transform_1, window_bounds = array<i64: 1, 8, 32>}, {pipeline_mode = #tpu.pipeline_mode<synchronous>, transform_indices = @transform_2, window_bounds = array<i64: 32, 32>}, {pipeline_mode = #tpu.pipeline_mode<synchronous>, transform_indices = @transform_3, window_bounds = array<i64: 32, 32>}, {pipeline_mode = #tpu.pipeline_mode<synchronous>, transform_indices = @transform_4, window_bounds = array<i64: 32, 32>}, {pipeline_mode = #tpu.pipeline_mode<synchronous>, transform_indices = @transform_5, window_bounds = array<i64: 1, 32>}, {pipeline_mode = #tpu.pipeline_mode<synchronous>, transform_indices = @transform_6, window_bounds = array<i64: 1, 32>}, {pipeline_mode = #tpu.pipeline_mode<synchronous>, transform_indices = @transform_7, window_bounds = array<i64: 1, 32>}, {transform_indices = @transform_8, window_bounds = array<i64: 1, 8, 32>}]} {
    %c0 = arith.constant 0 : index
    %c0_0 = arith.constant 0 : index
    %c0_1 = arith.constant 0 : index
    %0 = vector.load %arg2[%c0, %c0_0, %c0_1] : memref<1x8x32xf32, #tpu.memory_space<vmem>>, vector<1x8x32xf32>
    %1 = vector.shape_cast %0 : vector<1x8x32xf32> to vector<8x32xf32>
    %c0_i32 = arith.constant 0 : i32
    %2 = arith.cmpi eq, %arg1, %c0_i32 : i32
    %3 = arith.extui %2 : i1 to i32
    %c0_i32_2 = arith.constant 0 : i32
    %4 = arith.cmpi ne, %3, %c0_i32_2 : i32
    scf.if %4 {
      %c0_58 = arith.constant 0 : index
      %c0_59 = arith.constant 0 : index
      %c0_60 = arith.constant 0 : index
      %111 = vector.load %arg3[%c0_58, %c0_59, %c0_60] : memref<1x8x32xf32, #tpu.memory_space<vmem>>, vector<1x8x32xf32>
      %112 = vector.shape_cast %111 : vector<1x8x32xf32> to vector<8x32xf32>
      %c0_61 = arith.constant 0 : index
      %c0_62 = arith.constant 0 : index
      %113 = vector.load %arg5[%c0_61, %c0_62] : memref<32x32xf32, #tpu.memory_space<vmem>>, vector<32x32xf32>
      %cst_63 = arith.constant dense<0.000000e+00> : vector<8x32xf32>
      %114 = tpu.matmul %112, %113, %cst_63 {dimension_numbers = #tpu.dot_dimension_numbers<[1], [0], [0], [1], [0, 0, 1, 1], [], []>} : vector<8x32xf32>, vector<32x32xf32>, vector<8x32xf32> -> vector<8x32xf32>
      %c0_64 = arith.constant 0 : index
      %c0_65 = arith.constant 0 : index
      %115 = vector.load %arg8[%c0_64, %c0_65] : memref<1x32xf32, #tpu.memory_space<vmem>>, vector<1x32xf32>
      %116 = vector.broadcast %115 : vector<1x32xf32> to vector<8x32xf32>
      %117 = arith.addf %114, %116 : vector<8x32xf32>
      %c0_66 = arith.constant 0 : index
      %c0_67 = arith.constant 0 : index
      %118 = vector.load %arg6[%c0_66, %c0_67] : memref<32x32xf32, #tpu.memory_space<vmem>>, vector<32x32xf32>
      %cst_68 = arith.constant dense<0.000000e+00> : vector<8x32xf32>
      %119 = tpu.matmul %112, %118, %cst_68 {dimension_numbers = #tpu.dot_dimension_numbers<[1], [0], [0], [1], [0, 0, 1, 1], [], []>} : vector<8x32xf32>, vector<32x32xf32>, vector<8x32xf32> -> vector<8x32xf32>
      %c0_69 = arith.constant 0 : index
      %c0_70 = arith.constant 0 : index
      %120 = vector.load %arg9[%c0_69, %c0_70] : memref<1x32xf32, #tpu.memory_space<vmem>>, vector<1x32xf32>
      %121 = vector.broadcast %120 : vector<1x32xf32> to vector<8x32xf32>
      %122 = arith.addf %119, %121 : vector<8x32xf32>
      %c0_71 = arith.constant 0 : index
      %c0_72 = arith.constant 0 : index
      %123 = vector.load %arg11[%c0_71, %c0_72] : memref<8x32xf32, #tpu.memory_space<vmem>>, vector<8x32xf32>
      tpu.vector_store %arg11[%c0_71, %c0_72], %117 {strides = array<i32>} : memref<8x32xf32, #tpu.memory_space<vmem>>, vector<8x32xf32>,
      %c0_73 = arith.constant 0 : index
      %c0_74 = arith.constant 0 : index
      %124 = vector.load %arg12[%c0_73, %c0_74] : memref<8x32xf32, #tpu.memory_space<vmem>>, vector<8x32xf32>
      tpu.vector_store %arg12[%c0_73, %c0_74], %122 {strides = array<i32>} : memref<8x32xf32, #tpu.memory_space<vmem>>, vector<8x32xf32>,
      %cst_75 = arith.constant dense<0.000000e+00> : vector<8xf32>
      %125 = vector.multi_reduction <add>, %112, %cst_75 [1] : vector<8x32xf32> to vector<8xf32>
      %126 = vector.shape_cast %125 : vector<8xf32> to vector<8x1xf32>
      %cst_76 = arith.constant 0.000000e+00 : f32
      %127 = vector.broadcast %cst_76 : f32 to vector<8x1xf32>
      %128 = arith.cmpf one, %126, %127 : vector<8x1xf32>
      %129 = arith.extui %128 : vector<8x1xi1> to vector<8x1xi32>
      %130 = arith.sitofp %129 : vector<8x1xi32> to vector<8x1xf32>
      %131 = tpu.transpose %130, [1, 0] : vector<8x1xf32> -> vector<1x8xf32>
      %c0_77 = arith.constant 0 : index
      %c0_78 = arith.constant 0 : index
      %132 = vector.load %arg13[%c0_77, %c0_78] : memref<1x8xf32, #tpu.memory_space<vmem>>, vector<1x8xf32>
      tpu.vector_store %arg13[%c0_77, %c0_78], %131 {strides = array<i32>} : memref<1x8xf32, #tpu.memory_space<vmem>>, vector<1x8xf32>,
    } else {
    }
    %c0_3 = arith.constant 0 : index
    %c0_4 = arith.constant 0 : index
    %5 = vector.load %arg4[%c0_3, %c0_4] : memref<32x32xf32, #tpu.memory_space<vmem>>, vector<32x32xf32>
    %cst = arith.constant dense<0.000000e+00> : vector<8x32xf32>
    %6 = tpu.matmul %1, %5, %cst {dimension_numbers = #tpu.dot_dimension_numbers<[1], [0], [0], [1], [0, 0, 1, 1], [], []>} : vector<8x32xf32>, vector<32x32xf32>, vector<8x32xf32> -> vector<8x32xf32>
    %c0_5 = arith.constant 0 : index
    %c0_6 = arith.constant 0 : index
    %7 = vector.load %arg7[%c0_5, %c0_6] : memref<1x32xf32, #tpu.memory_space<vmem>>, vector<1x32xf32>
    %8 = vector.broadcast %7 : vector<1x32xf32> to vector<8x32xf32>
    %9 = arith.addf %6, %8 : vector<8x32xf32>
    %c8_i32 = arith.constant 8 : i32
    %10 = arith.muli %arg1, %c8_i32 : i32
    %11 = tpu.iota {dimensions = array<i32: 0>} : vector<8x8xi32>
    %12 = vector.broadcast %10 : i32 to vector<8x8xi32>
    %13 = arith.addi %12, %11 : vector<8x8xi32>
    %14 = tpu.iota {dimensions = array<i32: 1>} : vector<8x8xi32>
    %15 = arith.cmpi sle, %14, %13 : vector<8x8xi32>
    %c0_7 = arith.constant 0 : index
    %c0_8 = arith.constant 0 : index
    %16 = vector.load %arg13[%c0_7, %c0_8] : memref<1x8xf32, #tpu.memory_space<vmem>>, vector<1x8xf32>
    %cst_9 = arith.constant 0.000000e+00 : f32
    %17 = vector.broadcast %cst_9 : f32 to vector<1x8xf32>
    %18 = arith.cmpf one, %16, %17 : vector<1x8xf32>
    %19 = vector.broadcast %18 : vector<1x8xi1> to vector<8x8xi1>
    %20 = arith.andi %15, %19 : vector<8x8xi1>
    %cst_10 = arith.constant dense<0.000000e+00> : vector<8xf32>
    %21 = vector.multi_reduction <add>, %1, %cst_10 [1] : vector<8x32xf32> to vector<8xf32>
    %22 = vector.shape_cast %21 : vector<8xf32> to vector<8x1xf32>
    %cst_11 = arith.constant 0.000000e+00 : f32
    %23 = vector.broadcast %cst_11 : f32 to vector<8x1xf32>
    %24 = arith.cmpf one, %22, %23 : vector<8x1xf32>
    %25 = arith.extui %24 : vector<8x1xi1> to vector<8x1xi32>
    %26 = arith.sitofp %25 : vector<8x1xi32> to vector<8x1xf32>
    %27 = vector.extract_strided_slice %9 {offsets = [0, 0], sizes = [8, 8], strides = [1, 1]} : vector<8x32xf32> to vector<8x8xf32>
    %c0_12 = arith.constant 0 : index
    %c0_13 = arith.constant 0 : index
    %28 = vector.load %arg11[%c0_12, %c0_13] : memref<8x32xf32, #tpu.memory_space<vmem>>, vector<8x8xf32>
    %c0_14 = arith.constant 0 : index
    %c0_15 = arith.constant 0 : index
    %29 = vector.load %arg12[%c0_14, %c0_15] : memref<8x32xf32, #tpu.memory_space<vmem>>, vector<8x8xf32>
    %cst_16 = arith.constant dense<0.000000e+00> : vector<8x8xf32>
    %30 = tpu.matmul %27, %28, %cst_16 {dimension_numbers = #tpu.dot_dimension_numbers<[1], [1], [0], [0], [0, 0, 1, 0], [], []>} : vector<8x8xf32>, vector<8x8xf32>, vector<8x8xf32> -> vector<8x8xf32>
    %cst_17 = arith.constant -4.2949673E+9 : f32
    %31 = vector.broadcast %cst_17 : f32 to vector<8x8xf32>
    %32 = arith.select %20, %30, %31 : vector<8x8xi1>, vector<8x8xf32>
    %cst_18 = arith.constant dense<0xFF800000> : vector<8xf32>
    %33 = vector.multi_reduction <maximumf>, %32, %cst_18 [1] : vector<8x8xf32> to vector<8xf32>
    %34 = vector.shape_cast %33 : vector<8xf32> to vector<8x1xf32>
    %35 = vector.broadcast %34 : vector<8x1xf32> to vector<8x8xf32>
    %36 = arith.subf %32, %35 : vector<8x8xf32>
    %37 = math.exp %36 : vector<8x8xf32>
    %cst_19 = arith.constant dense<0.000000e+00> : vector<8xf32>
    %38 = vector.multi_reduction <add>, %37, %cst_19 [1] : vector<8x8xf32> to vector<8xf32>
    %39 = vector.shape_cast %38 : vector<8xf32> to vector<8x1xf32>
    %cst_20 = arith.constant dense<0.000000e+00> : vector<8x8xf32>
    %40 = tpu.matmul %37, %29, %cst_20 {dimension_numbers = #tpu.dot_dimension_numbers<[1], [0], [0], [1], [0, 0, 1, 1], [], []>} : vector<8x8xf32>, vector<8x8xf32>, vector<8x8xf32> -> vector<8x8xf32>
    %41 = arith.divf %26, %39 : vector<8x1xf32>
    %42 = vector.broadcast %41 : vector<8x1xf32> to vector<8x8xf32>
    %43 = arith.mulf %40, %42 : vector<8x8xf32>
    %44 = vector.extract_strided_slice %1 {offsets = [0, 0], sizes = [8, 8], strides = [1, 1]} : vector<8x32xf32> to vector<8x8xf32>
    %45 = arith.addf %43, %44 : vector<8x8xf32>
    %c0_21 = arith.constant 0 : index
    %c0_22 = arith.constant 0 : index
    %46 = vector.load %arg14[%c0_21, %c0_22] : memref<8x32xf32, #tpu.memory_space<vmem>>, vector<8x8xf32>
    tpu.vector_store %arg14[%c0_21, %c0_22], %45 {strides = array<i32>} : memref<8x32xf32, #tpu.memory_space<vmem>>, vector<8x8xf32>,
    %47 = vector.extract_strided_slice %9 {offsets = [0, 8], sizes = [8, 8], strides = [1, 1]} : vector<8x32xf32> to vector<8x8xf32>
    %c0_23 = arith.constant 0 : index
    %c8 = arith.constant 8 : index
    %48 = vector.load %arg11[%c0_23, %c8] : memref<8x32xf32, #tpu.memory_space<vmem>>, vector<8x8xf32>
    %c0_24 = arith.constant 0 : index
    %c8_25 = arith.constant 8 : index
    %49 = vector.load %arg12[%c0_24, %c8_25] : memref<8x32xf32, #tpu.memory_space<vmem>>, vector<8x8xf32>
    %cst_26 = arith.constant dense<0.000000e+00> : vector<8x8xf32>
    %50 = tpu.matmul %47, %48, %cst_26 {dimension_numbers = #tpu.dot_dimension_numbers<[1], [1], [0], [0], [0, 0, 1, 0], [], []>} : vector<8x8xf32>, vector<8x8xf32>, vector<8x8xf32> -> vector<8x8xf32>
    %cst_27 = arith.constant -4.2949673E+9 : f32
    %51 = vector.broadcast %cst_27 : f32 to vector<8x8xf32>
    %52 = arith.select %20, %50, %51 : vector<8x8xi1>, vector<8x8xf32>
    %cst_28 = arith.constant dense<0xFF800000> : vector<8xf32>
    %53 = vector.multi_reduction <maximumf>, %52, %cst_28 [1] : vector<8x8xf32> to vector<8xf32>
    %54 = vector.shape_cast %53 : vector<8xf32> to vector<8x1xf32>
    %55 = vector.broadcast %54 : vector<8x1xf32> to vector<8x8xf32>
    %56 = arith.subf %52, %55 : vector<8x8xf32>
    %57 = math.exp %56 : vector<8x8xf32>
    %cst_29 = arith.constant dense<0.000000e+00> : vector<8xf32>
    %58 = vector.multi_reduction <add>, %57, %cst_29 [1] : vector<8x8xf32> to vector<8xf32>
    %59 = vector.shape_cast %58 : vector<8xf32> to vector<8x1xf32>
    %cst_30 = arith.constant dense<0.000000e+00> : vector<8x8xf32>
    %60 = tpu.matmul %57, %49, %cst_30 {dimension_numbers = #tpu.dot_dimension_numbers<[1], [0], [0], [1], [0, 0, 1, 1], [], []>} : vector<8x8xf32>, vector<8x8xf32>, vector<8x8xf32> -> vector<8x8xf32>
    %61 = arith.divf %26, %59 : vector<8x1xf32>
    %62 = vector.broadcast %61 : vector<8x1xf32> to vector<8x8xf32>
    %63 = arith.mulf %60, %62 : vector<8x8xf32>
    %64 = vector.extract_strided_slice %1 {offsets = [0, 8], sizes = [8, 8], strides = [1, 1]} : vector<8x32xf32> to vector<8x8xf32>
    %65 = arith.addf %63, %64 : vector<8x8xf32>
    %c0_31 = arith.constant 0 : index
    %c8_32 = arith.constant 8 : index
    %66 = vector.load %arg14[%c0_31, %c8_32] : memref<8x32xf32, #tpu.memory_space<vmem>>, vector<8x8xf32>
    tpu.vector_store %arg14[%c0_31, %c8_32], %65 {strides = array<i32>} : memref<8x32xf32, #tpu.memory_space<vmem>>, vector<8x8xf32>,
    %67 = vector.extract_strided_slice %9 {offsets = [0, 16], sizes = [8, 8], strides = [1, 1]} : vector<8x32xf32> to vector<8x8xf32>
    %c0_33 = arith.constant 0 : index
    %c16 = arith.constant 16 : index
    %68 = vector.load %arg11[%c0_33, %c16] : memref<8x32xf32, #tpu.memory_space<vmem>>, vector<8x8xf32>
    %c0_34 = arith.constant 0 : index
    %c16_35 = arith.constant 16 : index
    %69 = vector.load %arg12[%c0_34, %c16_35] : memref<8x32xf32, #tpu.memory_space<vmem>>, vector<8x8xf32>
    %cst_36 = arith.constant dense<0.000000e+00> : vector<8x8xf32>
    %70 = tpu.matmul %67, %68, %cst_36 {dimension_numbers = #tpu.dot_dimension_numbers<[1], [1], [0], [0], [0, 0, 1, 0], [], []>} : vector<8x8xf32>, vector<8x8xf32>, vector<8x8xf32> -> vector<8x8xf32>
    %cst_37 = arith.constant -4.2949673E+9 : f32
    %71 = vector.broadcast %cst_37 : f32 to vector<8x8xf32>
    %72 = arith.select %20, %70, %71 : vector<8x8xi1>, vector<8x8xf32>
    %cst_38 = arith.constant dense<0xFF800000> : vector<8xf32>
    %73 = vector.multi_reduction <maximumf>, %72, %cst_38 [1] : vector<8x8xf32> to vector<8xf32>
    %74 = vector.shape_cast %73 : vector<8xf32> to vector<8x1xf32>
    %75 = vector.broadcast %74 : vector<8x1xf32> to vector<8x8xf32>
    %76 = arith.subf %72, %75 : vector<8x8xf32>
    %77 = math.exp %76 : vector<8x8xf32>
    %cst_39 = arith.constant dense<0.000000e+00> : vector<8xf32>
    %78 = vector.multi_reduction <add>, %77, %cst_39 [1] : vector<8x8xf32> to vector<8xf32>
    %79 = vector.shape_cast %78 : vector<8xf32> to vector<8x1xf32>
    %cst_40 = arith.constant dense<0.000000e+00> : vector<8x8xf32>
    %80 = tpu.matmul %77, %69, %cst_40 {dimension_numbers = #tpu.dot_dimension_numbers<[1], [0], [0], [1], [0, 0, 1, 1], [], []>} : vector<8x8xf32>, vector<8x8xf32>, vector<8x8xf32> -> vector<8x8xf32>
    %81 = arith.divf %26, %79 : vector<8x1xf32>
    %82 = vector.broadcast %81 : vector<8x1xf32> to vector<8x8xf32>
    %83 = arith.mulf %80, %82 : vector<8x8xf32>
    %84 = vector.extract_strided_slice %1 {offsets = [0, 16], sizes = [8, 8], strides = [1, 1]} : vector<8x32xf32> to vector<8x8xf32>
    %85 = arith.addf %83, %84 : vector<8x8xf32>
    %c0_41 = arith.constant 0 : index
    %c16_42 = arith.constant 16 : index
    %86 = vector.load %arg14[%c0_41, %c16_42] : memref<8x32xf32, #tpu.memory_space<vmem>>, vector<8x8xf32>
    tpu.vector_store %arg14[%c0_41, %c16_42], %85 {strides = array<i32>} : memref<8x32xf32, #tpu.memory_space<vmem>>, vector<8x8xf32>,
    %87 = vector.extract_strided_slice %9 {offsets = [0, 24], sizes = [8, 8], strides = [1, 1]} : vector<8x32xf32> to vector<8x8xf32>
    %c0_43 = arith.constant 0 : index
    %c24 = arith.constant 24 : index
    %88 = vector.load %arg11[%c0_43, %c24] : memref<8x32xf32, #tpu.memory_space<vmem>>, vector<8x8xf32>
    %c0_44 = arith.constant 0 : index
    %c24_45 = arith.constant 24 : index
    %89 = vector.load %arg12[%c0_44, %c24_45] : memref<8x32xf32, #tpu.memory_space<vmem>>, vector<8x8xf32>
    %cst_46 = arith.constant dense<0.000000e+00> : vector<8x8xf32>
    %90 = tpu.matmul %87, %88, %cst_46 {dimension_numbers = #tpu.dot_dimension_numbers<[1], [1], [0], [0], [0, 0, 1, 0], [], []>} : vector<8x8xf32>, vector<8x8xf32>, vector<8x8xf32> -> vector<8x8xf32>
    %cst_47 = arith.constant -4.2949673E+9 : f32
    %91 = vector.broadcast %cst_47 : f32 to vector<8x8xf32>
    %92 = arith.select %20, %90, %91 : vector<8x8xi1>, vector<8x8xf32>
    %cst_48 = arith.constant dense<0xFF800000> : vector<8xf32>
    %93 = vector.multi_reduction <maximumf>, %92, %cst_48 [1] : vector<8x8xf32> to vector<8xf32>
    %94 = vector.shape_cast %93 : vector<8xf32> to vector<8x1xf32>
    %95 = vector.broadcast %94 : vector<8x1xf32> to vector<8x8xf32>
    %96 = arith.subf %92, %95 : vector<8x8xf32>
    %97 = math.exp %96 : vector<8x8xf32>
    %cst_49 = arith.constant dense<0.000000e+00> : vector<8xf32>
    %98 = vector.multi_reduction <add>, %97, %cst_49 [1] : vector<8x8xf32> to vector<8xf32>
    %99 = vector.shape_cast %98 : vector<8xf32> to vector<8x1xf32>
    %cst_50 = arith.constant dense<0.000000e+00> : vector<8x8xf32>
    %100 = tpu.matmul %97, %89, %cst_50 {dimension_numbers = #tpu.dot_dimension_numbers<[1], [0], [0], [1], [0, 0, 1, 1], [], []>} : vector<8x8xf32>, vector<8x8xf32>, vector<8x8xf32> -> vector<8x8xf32>
    %101 = arith.divf %26, %99 : vector<8x1xf32>
    %102 = vector.broadcast %101 : vector<8x1xf32> to vector<8x8xf32>
    %103 = arith.mulf %100, %102 : vector<8x8xf32>
    %104 = vector.extract_strided_slice %1 {offsets = [0, 24], sizes = [8, 8], strides = [1, 1]} : vector<8x32xf32> to vector<8x8xf32>
    %105 = arith.addf %103, %104 : vector<8x8xf32>
    %c0_51 = arith.constant 0 : index
    %c24_52 = arith.constant 24 : index
    %106 = vector.load %arg14[%c0_51, %c24_52] : memref<8x32xf32, #tpu.memory_space<vmem>>, vector<8x8xf32>
    tpu.vector_store %arg14[%c0_51, %c24_52], %105 {strides = array<i32>} : memref<8x32xf32, #tpu.memory_space<vmem>>, vector<8x8xf32>,
    %c0_53 = arith.constant 0 : index
    %c0_54 = arith.constant 0 : index
    %107 = vector.load %arg14[%c0_53, %c0_54] : memref<8x32xf32, #tpu.memory_space<vmem>>, vector<8x32xf32>
    %c0_55 = arith.constant 0 : index
    %c0_56 = arith.constant 0 : index
    %c0_57 = arith.constant 0 : index
    %108 = vector.load %arg10[%c0_55, %c0_56, %c0_57] : memref<1x8x32xf32, #tpu.memory_space<vmem>>, vector<1x8x32xf32>
    %109 = vector.shape_cast %108 : vector<1x8x32xf32> to vector<8x32xf32>
    %110 = vector.shape_cast %107 : vector<8x32xf32> to vector<1x8x32xf32>
    tpu.vector_store %arg10[%c0_55, %c0_56, %c0_57], %110 {strides = array<i32>} : memref<1x8x32xf32, #tpu.memory_space<vmem>>, vector<1x8x32xf32>,
    return
  }
  func.func @transform_0(%arg0: i32, %arg1: i32) -> (i32, i32, i32) {
    %c0_i32 = arith.constant 0 : i32
    %c0_i32_0 = arith.constant 0 : i32
    return %arg0, %arg1, %c0_i32 : i32, i32, i32
  }
  func.func @transform_1(%arg0: i32, %arg1: i32) -> (i32, i32, i32) {
    %c0_i32 = arith.constant 0 : i32
    %c0_i32_0 = arith.constant 0 : i32
    %c0_i32_1 = arith.constant 0 : i32
    return %arg0, %c0_i32, %c0_i32_0 : i32, i32, i32
  }
  func.func @transform_2(%arg0: i32, %arg1: i32) -> (i32, i32) {
    %c0_i32 = arith.constant 0 : i32
    %c0_i32_0 = arith.constant 0 : i32
    %c0_i32_1 = arith.constant 0 : i32
    return %c0_i32, %c0_i32_0 : i32, i32
  }
  func.func @transform_3(%arg0: i32, %arg1: i32) -> (i32, i32) {
    %c0_i32 = arith.constant 0 : i32
    %c0_i32_0 = arith.constant 0 : i32
    %c0_i32_1 = arith.constant 0 : i32
    return %c0_i32, %c0_i32_0 : i32, i32
  }
  func.func @transform_4(%arg0: i32, %arg1: i32) -> (i32, i32) {
    %c0_i32 = arith.constant 0 : i32
    %c0_i32_0 = arith.constant 0 : i32
    %c0_i32_1 = arith.constant 0 : i32
    return %c0_i32, %c0_i32_0 : i32, i32
  }
  func.func @transform_5(%arg0: i32, %arg1: i32) -> (i32, i32) {
    %c0_i32 = arith.constant 0 : i32
    %c0_i32_0 = arith.constant 0 : i32
    %c0_i32_1 = arith.constant 0 : i32
    return %c0_i32, %c0_i32_0 : i32, i32
  }
  func.func @transform_6(%arg0: i32, %arg1: i32) -> (i32, i32) {
    %c0_i32 = arith.constant 0 : i32
    %c0_i32_0 = arith.constant 0 : i32
    %c0_i32_1 = arith.constant 0 : i32
    return %c0_i32, %c0_i32_0 : i32, i32
  }
  func.func @transform_7(%arg0: i32, %arg1: i32) -> (i32, i32) {
    %c0_i32 = arith.constant 0 : i32
    %c0_i32_0 = arith.constant 0 : i32
    %c0_i32_1 = arith.constant 0 : i32
    return %c0_i32, %c0_i32_0 : i32, i32
  }
  func.func @transform_8(%arg0: i32, %arg1: i32) -> (i32, i32, i32) {
    %c0_i32 = arith.constant 0 : i32
    %c0_i32_0 = arith.constant 0 : i32
    return %arg0, %arg1, %c0_i32 : i32, i32, i32
  }
}

</mosaic_0001>

<llo_original>
// kernel: tpu_custom_call.1
$region0: #{tpu_custom_call.1}
  #allocation0 [shape = 'u32[]', space=smem, size = 0x4, offset = 0x4, fixed_abs, tag = 'smem constant byte address 0x4 - core index']
  #allocation1 [shape = 'u32[144,128]{1,0:T(1,128)}', space=vmem, size = 0x12000, scoped, tag = 'internal scratch']
  #allocation2 [shape = 'f32[8,32]{1,0:T(8,128)}', space=vmem, size = 0x1000, scoped, tag = 'scratch operand']
  #allocation3 [shape = 'f32[8,32]{1,0:T(8,128)}', space=vmem, size = 0x1000, scoped, tag = 'scratch operand']
  #allocation4 [shape = 'f32[1,8]{1,0:T(1,128)}', space=vmem, size = 0x200, scoped, tag = 'scratch operand']
  #allocation5 [shape = 'f32[8,32]{1,0:T(8,128)}', space=vmem, size = 0x1000, scoped, tag = 'scratch operand']
  %s0 = inlined_call_operand.hbm [shape: f32[2,8,32], index: 0, kind: input, shape index: {}]
  %s1 = inlined_call_operand.hbm [shape: f32[2,8,32], index: 1, kind: input, shape index: {}]
  %s2 = inlined_call_operand.hbm [shape: f32[32,32], index: 2, kind: input, shape index: {}]
  %s3 = inlined_call_operand.hbm [shape: f32[32,32], index: 3, kind: input, shape index: {}]
  %s4 = inlined_call_operand.hbm [shape: f32[32,32], index: 4, kind: input, shape index: {}]
  %s5 = inlined_call_operand.vmem [shape: f32[1,32], index: 5, kind: input, shape index: {}]
  %s6 = inlined_call_operand.vmem [shape: f32[1,32], index: 6, kind: input, shape index: {}]
  %s7 = inlined_call_operand.vmem [shape: f32[1,32], index: 7, kind: input, shape index: {}]
  %s8 = inlined_call_operand.hbm [shape: f32[2,8,32], index: 8, kind: output, shape index: {}]
  %s9 = sld [smem:[#allocation0]]
  $region89: #{tpu_custom_call.1} parent=0
    _
  %s11 = ssub.s32 1, %s9
  %s12 = scalar_select 0, %s11, %s9
  $region1: #{tpu_custom_call.1} parent=0
    #allocation6 [shape = 'u8[8192]{0}', space=vmem, size = 0x2000, scoped, tag = 'input window, operand 0']
    #allocation7 [shape = 's32[2]{0}', space=sflag, size = 0x8, scoped, tag = 'scoped memory for tpu_custom_call.1']
    #allocation8 [shape = 's32[2]{0}', space=sflag, size = 0x8, scoped, tag = 'scoped memory for tpu_custom_call.1']
    #allocation9 [shape = 'u8[8192]{0}', space=vmem, size = 0x2000, scoped, tag = 'input window, operand 1']
    #allocation10 [shape = 's32[2]{0}', space=sflag, size = 0x8, scoped, tag = 'scoped memory for tpu_custom_call.1']
    #allocation11 [shape = 'u8[16384]{0}', space=vmem, size = 0x4000, scoped, tag = 'input window, operand 2, single buffered']
    #allocation12 [shape = 'u8[16384]{0}', space=vmem, size = 0x4000, scoped, tag = 'input window, operand 3, single buffered']
    #allocation13 [shape = 's32[1]{0}', space=sflag, size = 0x4, scoped, tag = 'scoped memory for tpu_custom_call.1']
    #allocation14 [shape = 'u8[16384]{0}', space=vmem, size = 0x4000, scoped, tag = 'input window, operand 4, single buffered']
    #allocation15 [shape = 'u8[8192]{0}', space=vmem, size = 0x2000, scoped, tag = 'output window, operand 0']
    %13 = vsyncpa [#allocation7], 0
    %s14 = scalar_lea.sflag [#allocation7], 1
    %15 = vsyncpa %s14, 0
    %16 = vsyncpa [#allocation10], 0
    %s17 = scalar_lea.sflag [#allocation10], 1
    %18 = vsyncpa %s17, 0
    %19 = vsyncpa [#allocation13], 0
    %20 = vsyncpa [#allocation8], 0
    %s21 = scalar_lea.sflag [#allocation8], 1
    %22 = vsyncpa %s21, 0
    loop: start=0, step=1, limit=4
    $region2: #{tpu_custom_call.1} parent=1 // loop_pre_header
      _
    $region3: #{tpu_custom_call.1} parent=1 // loop_header
      %s24 = sphi 0, %s28
      %p25 = scmp.ge.s32.totalorder %s24, 4
      %s31 = sphi 0, %s43
      %s32 = sphi 0, %s39
      %s33 = sphi 0, %s31
      %s34 = sphi 0, %s32
      %s35 = sphi 0, %s33
      %s36 = sphi 0, %s34
      %s48 = sphi 0, %s50
      %s51 = sphi 0, %s48
      %s52 = sphi 0, %s51
      %s68 = sphi 0, %s52
      %s74 = sphi 0, %s76
      %s77 = sphi 0, %s74
      %s78 = sphi 0, %s77
      %s94 = sphi 0, %s78
      %s98 = sphi 0, %s98
      %s100 = sphi 0, %s98
      %s101 = sphi 0, %s100
      %s115 = sphi 0, %s101
      %s119 = sphi 0, %s119
      %s121 = sphi 0, %s119
      %s122 = sphi 0, %s121
      %s136 = sphi 0, %s122
      %s140 = sphi 0, %s140
      %s142 = sphi 0, %s140
      %s143 = sphi 0, %s142
      %s157 = sphi 0, %s143
      %s161 = sphi 0, %s161
      %s163 = sphi 0, %s161
      %s164 = sphi 0, %s163
      %s178 = sphi 0, %s164
      %s182 = sphi 0, %s182
      %s184 = sphi 0, %s182
      %s185 = sphi 0, %s184
      %s199 = sphi 0, %s185
      %s203 = sphi 0, %s203
      %s205 = sphi 0, %s203
      %s206 = sphi 0, %s205
      %s220 = sphi 0, %s206
      %s228 = sphi 0, %s230
      %s231 = sphi 0, %s228
      %s232 = sphi 0, %s231
      %s248 = sphi 0, %s232
    $region4: #{tpu_custom_call.1} parent=1 // loop_header_branch
      %27 = sbr.rel (%p25) target = $region8
    $region5: #{tpu_custom_call.1} parent=1 // loop_body
      %s29 = ssub.s32 %s24, 1
      %s30 = ssub.s32 %s24, 2
      %s37 = sadd.s32 1, %s32
      %p38 = scmp.ge.s32.totalorder %s37, 1
      %s39 = scalar_select %p38, 0, %s37
      %s40 = sadd.s32 1, %s31
      %s41 = scalar_select %p38, %s40, %s31
      %p42 = scmp.ge.s32.totalorder %s41, 2
      %s43 = scalar_select %p42, 0, %s41
      %s44 = ssub.s32 %s31, %s43
      %s45 = ssub.s32 %s32, %s39
      %s46 = sor.u32 %s44, %s45
      %p47 = scmp.eq.s32.totalorder %s46, 0
      %s49 = sadd.s32 %s48, 1
      %s50 = scalar_select %p47, %s48, %s49
      %p53 = pneg %p47
      %p54 = scmp.eq.s32.totalorder %s24, 1
      %p55 = por %p53, %p54
      %p56 = scmp.ne.s32.totalorder %s48, %s51
      %p57 = scmp.eq.s32.totalorder %s24, 0
      %p58 = por %p56, %p57
      %p59 = scmp.ne.s32.totalorder %s48, %s51
      %p60 = scmp.eq.s32.totalorder %s29, 1
      %p61 = por %p59, %p60
      %p62 = scmp.ne.s32.totalorder %s51, %s52
      %p63 = scmp.eq.s32.totalorder %s29, 0
      %p64 = por %p62, %p63
      %p65 = scmp.ne.s32.totalorder %s51, %s52
      %p66 = scmp.eq.s32.totalorder %s30, 1
      %p67 = por %p65, %p66
      %p69 = scmp.ne.s32.totalorder %s52, %s68
      %p70 = scmp.eq.s32.totalorder %s30, 0
      %p71 = por %p69, %p70
      %s72 = ssub.s32 %s31, %s43
      %p73 = scmp.eq.s32.totalorder %s72, 0
      %s75 = sadd.s32 %s74, 1
      %s76 = scalar_select %p73, %s74, %s75
      %p79 = pneg %p73
      %p80 = scmp.eq.s32.totalorder %s24, 1
      %p81 = por %p79, %p80
      %p82 = scmp.ne.s32.totalorder %s74, %s77
      %p83 = scmp.eq.s32.totalorder %s24, 0
      %p84 = por %p82, %p83
      %p85 = scmp.ne.s32.totalorder %s74, %s77
      %p86 = scmp.eq.s32.totalorder %s29, 1
      %p87 = por %p85, %p86
      %p88 = scmp.ne.s32.totalorder %s77, %s78
      %p89 = scmp.eq.s32.totalorder %s29, 0
      %p90 = por %p88, %p89
      %p91 = scmp.ne.s32.totalorder %s77, %s78
      %p92 = scmp.eq.s32.totalorder %s30, 1
      %p93 = por %p91, %p92
      %p95 = scmp.ne.s32.totalorder %s78, %s94
      %p96 = scmp.eq.s32.totalorder %s30, 0
      %p97 = por %p95, %p96
      %s99 = sadd.s32 %s98, 1
      %p102 = scmp.eq.s32.totalorder %s24, 1
      %p103 = scmp.ne.s32.totalorder %s98, %s100
      %p104 = scmp.eq.s32.totalorder %s24, 0
      %p105 = por %p103, %p104
      %p106 = scmp.ne.s32.totalorder %s98, %s100
      %p107 = scmp.eq.s32.totalorder %s29, 1
      %p108 = por %p106, %p107
      %p109 = scmp.ne.s32.totalorder %s100, %s101
      %p110 = scmp.eq.s32.totalorder %s29, 0
      %p111 = por %p109, %p110
      %p112 = scmp.ne.s32.totalorder %s100, %s101
      %p113 = scmp.eq.s32.totalorder %s30, 1
      %p114 = por %p112, %p113
      %p116 = scmp.ne.s32.totalorder %s101, %s115
      %p117 = scmp.eq.s32.totalorder %s30, 0
      %p118 = por %p116, %p117
      %s120 = sadd.s32 %s119, 1
      %p123 = scmp.eq.s32.totalorder %s24, 1
      %p124 = scmp.ne.s32.totalorder %s119, %s121
      %p125 = scmp.eq.s32.totalorder %s24, 0
      %p126 = por %p124, %p125
      %p127 = scmp.ne.s32.totalorder %s119, %s121
      %p128 = scmp.eq.s32.totalorder %s29, 1
      %p129 = por %p127, %p128
      %p130 = scmp.ne.s32.totalorder %s121, %s122
      %p131 = scmp.eq.s32.totalorder %s29, 0
      %p132 = por %p130, %p131
      %p133 = scmp.ne.s32.totalorder %s121, %s122
      %p134 = scmp.eq.s32.totalorder %s30, 1
      %p135 = por %p133, %p134
      %p137 = scmp.ne.s32.totalorder %s122, %s136
      %p138 = scmp.eq.s32.totalorder %s30, 0
      %p139 = por %p137, %p138
      %s141 = sadd.s32 %s140, 1
      %p144 = scmp.eq.s32.totalorder %s24, 1
      %p145 = scmp.ne.s32.totalorder %s140, %s142
      %p146 = scmp.eq.s32.totalorder %s24, 0
      %p147 = por %p145, %p146
      %p148 = scmp.ne.s32.totalorder %s140, %s142
      %p149 = scmp.eq.s32.totalorder %s29, 1
      %p150 = por %p148, %p149
      %p151 = scmp.ne.s32.totalorder %s142, %s143
      %p152 = scmp.eq.s32.totalorder %s29, 0
      %p153 = por %p151, %p152
      %p154 = scmp.ne.s32.totalorder %s142, %s143
      %p155 = scmp.eq.s32.totalorder %s30, 1
      %p156 = por %p154, %p155
      %p158 = scmp.ne.s32.totalorder %s143, %s157
      %p159 = scmp.eq.s32.totalorder %s30, 0
      %p160 = por %p158, %p159
      %s162 = sadd.s32 %s161, 1
      %p165 = scmp.eq.s32.totalorder %s24, 1
      %p166 = scmp.ne.s32.totalorder %s161, %s163
      %p167 = scmp.eq.s32.totalorder %s24, 0
      %p168 = por %p166, %p167
      %p169 = scmp.ne.s32.totalorder %s161, %s163
      %p170 = scmp.eq.s32.totalorder %s29, 1
      %p171 = por %p169, %p170
      %p172 = scmp.ne.s32.totalorder %s163, %s164
      %p173 = scmp.eq.s32.totalorder %s29, 0
      %p174 = por %p172, %p173
      %p175 = scmp.ne.s32.totalorder %s163, %s164
      %p176 = scmp.eq.s32.totalorder %s30, 1
      %p177 = por %p175, %p176
      %p179 = scmp.ne.s32.totalorder %s164, %s178
      %p180 = scmp.eq.s32.totalorder %s30, 0
      %p181 = por %p179, %p180
      %s183 = sadd.s32 %s182, 1
      %p186 = scmp.eq.s32.totalorder %s24, 1
      %p187 = scmp.ne.s32.totalorder %s182, %s184
      %p188 = scmp.eq.s32.totalorder %s24, 0
      %p189 = por %p187, %p188
      %p190 = scmp.ne.s32.totalorder %s182, %s184
      %p191 = scmp.eq.s32.totalorder %s29, 1
      %p192 = por %p190, %p191
      %p193 = scmp.ne.s32.totalorder %s184, %s185
      %p194 = scmp.eq.s32.totalorder %s29, 0
      %p195 = por %p193, %p194
      %p196 = scmp.ne.s32.totalorder %s184, %s185
      %p197 = scmp.eq.s32.totalorder %s30, 1
      %p198 = por %p196, %p197
      %p200 = scmp.ne.s32.totalorder %s185, %s199
      %p201 = scmp.eq.s32.totalorder %s30, 0
      %p202 = por %p200, %p201
      %s204 = sadd.s32 %s203, 1
      %p207 = scmp.eq.s32.totalorder %s24, 1
      %p208 = scmp.ne.s32.totalorder %s203, %s205
      %p209 = scmp.eq.s32.totalorder %s24, 0
      %p210 = por %p208, %p209
      %p211 = scmp.ne.s32.totalorder %s203, %s205
      %p212 = scmp.eq.s32.totalorder %s29, 1
      %p213 = por %p211, %p212
      %p214 = scmp.ne.s32.totalorder %s205, %s206
      %p215 = scmp.eq.s32.totalorder %s29, 0
      %p216 = por %p214, %p215
      %p217 = scmp.ne.s32.totalorder %s205, %s206
      %p218 = scmp.eq.s32.totalorder %s30, 1
      %p219 = por %p217, %p218
      %p221 = scmp.ne.s32.totalorder %s206, %s220
      %p222 = scmp.eq.s32.totalorder %s30, 0
      %p223 = por %p221, %p222
      %s224 = ssub.s32 %s31, %s43
      %s225 = ssub.s32 %s32, %s39
      %s226 = sor.u32 %s224, %s225
      %p227 = scmp.eq.s32.totalorder %s226, 0
      %s229 = sadd.s32 %s228, 1
      %s230 = scalar_select %p227, %s228, %s229
      %p233 = pneg %p227
      %p234 = scmp.eq.s32.totalorder %s24, 1
      %p235 = por %p233, %p234
      %p236 = scmp.ne.s32.totalorder %s228, %s231
      %p237 = scmp.eq.s32.totalorder %s24, 0
      %p238 = por %p236, %p237
      %p239 = scmp.ne.s32.totalorder %s228, %s231
      %p240 = scmp.eq.s32.totalorder %s29, 1
      %p241 = por %p239, %p240
      %p242 = scmp.ne.s32.totalorder %s231, %s232
      %p243 = scmp.eq.s32.totalorder %s29, 0
      %p244 = por %p242, %p243
      %p245 = scmp.ne.s32.totalorder %s231, %s232
      %p246 = scmp.eq.s32.totalorder %s30, 1
      %p247 = por %p245, %p246
      %p249 = scmp.ne.s32.totalorder %s232, %s248
      %p250 = scmp.eq.s32.totalorder %s30, 0
      %p251 = por %p249, %p250
      %p252 = scmp.le.s32.totalorder 1, %s24
      %p253 = scmp.lt.s32.totalorder %s24, 3
      %p254 = pnand %p252, %p253
      %p255 = pneg %p254
      // Predicated region
      $region9: #{tpu_custom_call.1} parent=5 // pred_check
        _
      $region10: #{tpu_custom_call.1} parent=5 // pred_check_branch
        %257 = sbr.rel (%p254) target = $region12
      $region11: #{tpu_custom_call.1} parent=5 // pred_region
        %s258 = ssub.s32 %s24, 1
        // Predicated region
        $region13: #{tpu_custom_call.1} parent=11 // pred_check
          %p259 = pneg %p111
        $region14: #{tpu_custom_call.1} parent=11 // pred_check_branch
          %261 = sbr.rel (%p259) target = $region16
        $region15: #{tpu_custom_call.1} parent=11 // pred_region
          %s263 = ssub.s32 512, 512
          %264 = vsyncadd [#allocation10], %s263
          %s265 = sshll.u32 [#allocation11], 4
          %s266 = int_to_ptr.vmem [resolvable:$true] %s265
          %271 = dma.hbm_to_vmem [thread:$0]  %s2, 512, %s266, [#allocation10], 128, 128, 8
        $region16: #{tpu_custom_call.1} parent=11 // pred_fallthru
          _
        // Predicated region
        $region17: #{tpu_custom_call.1} parent=11 // pred_check
          %p272 = pneg %p132
        $region18: #{tpu_custom_call.1} parent=11 // pred_check_branch
          %274 = sbr.rel (%p272) target = $region20
        $region19: #{tpu_custom_call.1} parent=11 // pred_region
          %s276 = ssub.s32 512, 512
          %277 = vsyncadd [#allocation13], %s276
          %s278 = sshll.u32 [#allocation12], 4
          %s279 = int_to_ptr.vmem [resolvable:$true] %s278
          %284 = dma.hbm_to_vmem [thread:$0]  %s3, 512, %s279, [#allocation13], 128, 128, 8
        $region20: #{tpu_custom_call.1} parent=11 // pred_fallthru
          _
        // Predicated region
        $region21: #{tpu_custom_call.1} parent=11 // pred_check
          %p285 = pneg %p153
        $region22: #{tpu_custom_call.1} parent=11 // pred_check_branch
          %287 = sbr.rel (%p285) target = $region24
        $region23: #{tpu_custom_call.1} parent=11 // pred_region
          %s289 = ssub.s32 512, 512
          %290 = vsyncadd [#allocation13], %s289
          %s291 = sshll.u32 [#allocation14], 4
          %s292 = int_to_ptr.vmem [resolvable:$true] %s291
          %297 = dma.hbm_to_vmem [thread:$0]  %s4, 512, %s292, [#allocation13], 128, 128, 8
        $region24: #{tpu_custom_call.1} parent=11 // pred_fallthru
          _
        // Predicated region
        $region25: #{tpu_custom_call.1} parent=11 // pred_check
          %p298 = pneg %p174
        $region26: #{tpu_custom_call.1} parent=11 // pred_check_branch
          %300 = sbr.rel (%p298) target = $region28
        $region27: #{tpu_custom_call.1} parent=11 // pred_region
          _
        $region28: #{tpu_custom_call.1} parent=11 // pred_fallthru
          _
        // Predicated region
        $region29: #{tpu_custom_call.1} parent=11 // pred_check
          %p301 = pneg %p195
        $region30: #{tpu_custom_call.1} parent=11 // pred_check_branch
          %303 = sbr.rel (%p301) target = $region32
        $region31: #{tpu_custom_call.1} parent=11 // pred_region
          _
        $region32: #{tpu_custom_call.1} parent=11 // pred_fallthru
          _
        // Predicated region
        $region33: #{tpu_custom_call.1} parent=11 // pred_check
          %p304 = pneg %p216
        $region34: #{tpu_custom_call.1} parent=11 // pred_check_branch
          %306 = sbr.rel (%p304) target = $region36
        $region35: #{tpu_custom_call.1} parent=11 // pred_region
          _
        $region36: #{tpu_custom_call.1} parent=11 // pred_fallthru
          _
      $region12: #{tpu_custom_call.1} parent=5 // pred_fallthru
        _
      %p307 = scmp.lt.s32.totalorder %s24, 2
      // Predicated region
      $region37: #{tpu_custom_call.1} parent=5 // pred_check
        %p308 = pneg %p307
      $region38: #{tpu_custom_call.1} parent=5 // pred_check_branch
        %310 = sbr.rel (%p308) target = $region40
      $region39: #{tpu_custom_call.1} parent=5 // pred_region
        // Predicated region
        $region41: #{tpu_custom_call.1} parent=39 // pred_check
          %p311 = pneg %p58
        $region42: #{tpu_custom_call.1} parent=39 // pred_check_branch
          %313 = sbr.rel (%p311) target = $region44
        $region43: #{tpu_custom_call.1} parent=39 // pred_region
          %s314 = sand.u32 %s48, 1
          %s315 = scalar_lea.sflag [#allocation7], %s314
          %s316 = sand.u32 %s48, 1
          %s317 = smul.addr %s316, 8
          %s318 = scalar_lea.vmem [#allocation6], %s317
          %s320 = ssub.s32 128, 128
          %321 = vsyncadd %s315, %s320
          %s322 = sadd.s32 %s32, %s31
          %s323 = smul.addr %s322, 128
          %s324 = scalar_lea.hbm %s0, %s323
          %s326 = sshll.u32 %s318, 4
          %s327 = int_to_ptr.vmem [resolvable:$true] %s326
          %329 = dma.hbm_to_vmem [thread:$0]  %s324, 128, %s327, %s315
        $region44: #{tpu_custom_call.1} parent=39 // pred_fallthru
          _
        // Predicated region
        $region45: #{tpu_custom_call.1} parent=39 // pred_check
          %p330 = pneg %p84
        $region46: #{tpu_custom_call.1} parent=39 // pred_check_branch
          %332 = sbr.rel (%p330) target = $region48
        $region47: #{tpu_custom_call.1} parent=39 // pred_region
          %s333 = sand.u32 %s24, 1
          %s334 = scalar_lea.sflag [#allocation10], %s333
          %s335 = sand.u32 %s74, 1
          %s336 = smul.addr %s335, 8
          %s337 = scalar_lea.vmem [#allocation9], %s336
          %s339 = ssub.s32 128, 128
          %340 = vsyncadd %s334, %s339
          %s341 = smul.addr %s31, 128
          %s342 = scalar_lea.hbm %s1, %s341
          %s344 = sshll.u32 %s337, 4
          %s345 = int_to_ptr.vmem [resolvable:$true] %s344
          %347 = dma.hbm_to_vmem [thread:$0]  %s342, 128, %s345, %s334
        $region48: #{tpu_custom_call.1} parent=39 // pred_fallthru
          _
      $region40: #{tpu_custom_call.1} parent=5 // pred_fallthru
        _
      %p348 = scmp.le.s32.totalorder 1, %s24
      %p349 = scmp.lt.s32.totalorder %s24, 3
      %p350 = pnand %p348, %p349
      %p351 = pneg %p350
      // Predicated region
      $region49: #{tpu_custom_call.1} parent=5 // pred_check
        _
      $region50: #{tpu_custom_call.1} parent=5 // pred_check_branch
        %353 = sbr.rel (%p350) target = $region52
      $region51: #{tpu_custom_call.1} parent=5 // pred_region
        %s354 = ssub.s32 %s24, 1
        %s355 = sand.u32 %s51, 1
        %s356 = scalar_lea.sflag [#allocation7], %s355
        %s357 = sand.u32 %s51, 1
        %s358 = smul.addr %s357, 8
        %s359 = scalar_lea.vmem [#allocation6], %s358
        // Predicated region
        $region53: #{tpu_custom_call.1} parent=51 // pred_check
          %p360 = pneg %p64
        $region54: #{tpu_custom_call.1} parent=51 // pred_check_branch
          %362 = sbr.rel (%p360) target = $region56
        $region55: #{tpu_custom_call.1} parent=51 // pred_region
          %363 = dma.done %s356, 128
        $region56: #{tpu_custom_call.1} parent=51 // pred_fallthru
          _
        %s364 = sand.u32 %s29, 1
        %s365 = scalar_lea.sflag [#allocation10], %s364
        %s366 = sand.u32 %s77, 1
        %s367 = smul.addr %s366, 8
        %s368 = scalar_lea.vmem [#allocation9], %s367
        // Predicated region
        $region57: #{tpu_custom_call.1} parent=51 // pred_check
          %p369 = pneg %p90
        $region58: #{tpu_custom_call.1} parent=51 // pred_check_branch
          %371 = sbr.rel (%p369) target = $region60
        $region59: #{tpu_custom_call.1} parent=51 // pred_region
          %372 = dma.done %s365, 128
        $region60: #{tpu_custom_call.1} parent=51 // pred_fallthru
          _
        // Predicated region
        $region61: #{tpu_custom_call.1} parent=51 // pred_check
          %p373 = pneg %p111
        $region62: #{tpu_custom_call.1} parent=51 // pred_check_branch
          %375 = sbr.rel (%p373) target = $region64
        $region63: #{tpu_custom_call.1} parent=51 // pred_region
          %376 = dma.done [#allocation10], 512
        $region64: #{tpu_custom_call.1} parent=51 // pred_fallthru
          _
        // Predicated region
        $region65: #{tpu_custom_call.1} parent=51 // pred_check
          %p377 = pneg %p132
        $region66: #{tpu_custom_call.1} parent=51 // pred_check_branch
          %379 = sbr.rel (%p377) target = $region68
        $region67: #{tpu_custom_call.1} parent=51 // pred_region
          %380 = dma.done [#allocation13], 512
        $region68: #{tpu_custom_call.1} parent=51 // pred_fallthru
          _
        // Predicated region
        $region69: #{tpu_custom_call.1} parent=51 // pred_check
          %p381 = pneg %p153
        $region70: #{tpu_custom_call.1} parent=51 // pred_check_branch
          %383 = sbr.rel (%p381) target = $region72
        $region71: #{tpu_custom_call.1} parent=51 // pred_region
          %384 = dma.done [#allocation13], 512
        $region72: #{tpu_custom_call.1} parent=51 // pred_fallthru
          _
        %s385 = sand.u32 %s51, 1
        %s386 = scalar_lea.sflag [#allocation7], %s385
        %s387 = sand.u32 %s51, 1
        %s388 = smul.addr %s387, 8
        %s389 = scalar_lea.vmem [#allocation6], %s388
        %p390 = pneg %p64
        %p391 = pneg %p61
        %s392 = sand.u32 %s29, 1
        %s393 = scalar_lea.sflag [#allocation10], %s392
        %s394 = sand.u32 %s77, 1
        %s395 = smul.addr %s394, 8
        %s396 = scalar_lea.vmem [#allocation9], %s395
        %p397 = pneg %p90
        %p398 = pneg %p87
        %p399 = pneg %p111
        %p400 = pneg %p108
        %p401 = pneg %p132
        %p402 = pneg %p129
        %p403 = pneg %p153
        %p404 = pneg %p150
        %p405 = pneg %p174
        %p406 = pneg %p171
        %p407 = pneg %p195
        %p408 = pneg %p192
        %p409 = pneg %p216
        %p410 = pneg %p213
        %p411 = pneg %p244
        %p412 = pneg %p241
        %s413 = sand.u32 %s231, 1
        %s414 = scalar_lea.sflag [#allocation8], %s413
        %s415 = sand.u32 %s231, 1
        %s416 = smul.addr %s415, 8
        %s417 = scalar_lea.vmem [#allocation15], %s416
        %v418 = vld [vmem:[%s359] sm:$0xff]
        %p419 = scmp.eq.s32.totalorder %s34, 0
        // Predicated region
        $region73: #{tpu_custom_call.1} parent=51 // pred_check
          %p420 = pneg %p419
        $region74: #{tpu_custom_call.1} parent=51 // pred_check_branch
          %422 = sbr.rel (%p420) target = $region76
        $region75: #{tpu_custom_call.1} parent=51 // pred_region
          %v423 = vld [vmem:[%s368] sm:$0xff]
          %v424 = vld [vmem:[#allocation12] sm:$0xff]
          %v425 = vld [vmem:[#allocation12 + $0x8] sm:$0xff]
          %v426 = vld [vmem:[#allocation12 + $0x10] sm:$0xff]
          %v427 = vld [vmem:[#allocation12 + $0x18] sm:$0xff]
          %v428 = vld [vmem:[%s6] sm:$0x1]
          %v430 = vlaneseq
          %v431 = vshrl.u32 %v430, 7
          %v432 = vsub.s32 0, %v431
          %v433 = vrot.slane %v428, %v432
          %vm435 = vcmask 261120
          %v437 = vsel %vm435, %v423, 0
          %439 = vmatprep.subr.mxu0 0.0
          %440 = vmatpush1.msra.mxu0 %v424
          %441 = vmatprep.subr.mxu0 0.0
          %442 = vmatpush1.msra.mxu0 %v425
          %443 = vmatprep.subr.mxu0 0.0
          %444 = vmatpush1.msra.mxu0 %v426
          %445 = vmatprep.subr.mxu0 0.0
          %446 = vmatpush1.msra.mxu0 %v427
          %447 = vmatprep.subr.mxu0 0.0
          %448 = vmatpush1.msra.mxu0 0.0
          %449 = vmatprep.subr.mxu0 0.0
          %450 = vmatpush1.msra.mxu0 0.0
          %451 = vmatprep.subr.mxu0 0.0
          %452 = vmatpush1.msra.mxu0 0.0
          %453 = vmatprep.subr.mxu0 0.0
          %454 = vmatpush1.msra.mxu0 0.0
          %455 = vmatprep.subr.mxu0 0.0
          %456 = vmatpush1.msra.mxu0 0.0
          %457 = vmatprep.subr.mxu0 0.0
          %458 = vmatpush1.msra.mxu0 0.0
          %459 = vmatprep.subr.mxu0 0.0
          %460 = vmatpush1.msra.mxu0 0.0
          %461 = vmatprep.subr.mxu0 0.0
          %462 = vmatpush1.msra.mxu0 0.0
          %463 = vmatprep.subr.mxu0 0.0
          %464 = vmatpush1.msra.mxu0 0.0
          %465 = vmatprep.subr.mxu0 0.0
          %466 = vmatpush1.msra.mxu0 0.0
          %467 = vmatprep.subr.mxu0 0.0
          %468 = vmatpush1.msra.mxu0 0.0
          %469 = vmatprep.subr.mxu0 0.0
          %470 = vmatpush1.msra.mxu0 0.0
          %471 = vmatprep.subr.mxu0 0.0
          %472 = vmatpush1.msra.mxu0 0.0
          %473 = vmatprep.subr.mxu0 0.0
          %474 = vmatpush1.msra.mxu0 0.0
          %475 = vmatprep.subr.mxu0 0.0
          %476 = vmatpush1.msra.mxu0 0.0
          %477 = vmatprep.subr.mxu0 0.0
          %478 = vmatpush1.msra.mxu0 0.0
          %479 = vmatprep.subr.mxu0 0.0
          %480 = vmatpush1.msra.mxu0 0.0
          %481 = vmatprep.subr.mxu0 0.0
          %482 = vmatpush1.msra.mxu0 0.0
          %483 = vmatprep.subr.mxu0 0.0
          %484 = vmatpush1.msra.mxu0 0.0
          %485 = vmatprep.subr.mxu0 0.0
          %486 = vmatpush1.msra.mxu0 0.0
          %487 = vmatprep.subr.mxu0 0.0
          %488 = vmatpush1.msra.mxu0 0.0
          %489 = vmatprep.subr.mxu0 0.0
          %490 = vmatpush1.msra.mxu0 0.0
          %491 = vmatprep.subr.mxu0 0.0
          %492 = vmatpush1.msra.mxu0 0.0
          %493 = vmatprep.subr.mxu0 0.0
          %494 = vmatpush1.msra.mxu0 0.0
          %495 = vmatprep.subr.mxu0 0.0
          %496 = vmatpush1.msra.mxu0 0.0
          %497 = vmatprep.subr.mxu0 0.0
          %498 = vmatpush1.msra.mxu0 0.0
          %499 = vmatprep.subr.mxu0 0.0
          %500 = vmatpush1.msra.mxu0 0.0
          %501 = vmatprep.subr.mxu0 0.0
          %502 = vmatpush1.msra.mxu0 0.0
          %503 = vmatprep.mubr.f32.mxu0 0.0
          %504 = vmatmul.mubr.f32.gmra.mrb[0].mxu0 %v437
          %v505 = vpop.f32.mrb[0].mxu0
          %v506 = vadd.f32 %v433, %v505
          %v507 = vpop.f32.mrb[0].mxu0
          %508 = vdwg.mxu0
          %v509 = vld [vmem:[#allocation14] sm:$0xff]
          %v510 = vld [vmem:[#allocation14 + $0x8] sm:$0xff]
          %v511 = vld [vmem:[#allocation14 + $0x10] sm:$0xff]
          %v512 = vld [vmem:[#allocation14 + $0x18] sm:$0xff]
          %v513 = vld [vmem:[%s7] sm:$0x1]
          %v515 = vlaneseq
          %v516 = vshrl.u32 %v515, 7
          %v517 = vsub.s32 0, %v516
          %v518 = vrot.slane %v513, %v517
          %520 = vmatprep.subr.mxu0 0.0
          %521 = vmatpush1.msra.mxu0 %v509
          %522 = vmatprep.subr.mxu0 0.0
          %523 = vmatpush1.msra.mxu0 %v510
          %524 = vmatprep.subr.mxu0 0.0
          %525 = vmatpush1.msra.mxu0 %v511
          %526 = vmatprep.subr.mxu0 0.0
          %527 = vmatpush1.msra.mxu0 %v512
          %528 = vmatprep.subr.mxu0 0.0
          %529 = vmatpush1.msra.mxu0 0.0
          %530 = vmatprep.subr.mxu0 0.0
          %531 = vmatpush1.msra.mxu0 0.0
          %532 = vmatprep.subr.mxu0 0.0
          %533 = vmatpush1.msra.mxu0 0.0
          %534 = vmatprep.subr.mxu0 0.0
          %535 = vmatpush1.msra.mxu0 0.0
          %536 = vmatprep.subr.mxu0 0.0
          %537 = vmatpush1.msra.mxu0 0.0
          %538 = vmatprep.subr.mxu0 0.0
          %539 = vmatpush1.msra.mxu0 0.0
          %540 = vmatprep.subr.mxu0 0.0
          %541 = vmatpush1.msra.mxu0 0.0
          %542 = vmatprep.subr.mxu0 0.0
          %543 = vmatpush1.msra.mxu0 0.0
          %544 = vmatprep.subr.mxu0 0.0
          %545 = vmatpush1.msra.mxu0 0.0
          %546 = vmatprep.subr.mxu0 0.0
          %547 = vmatpush1.msra.mxu0 0.0
          %548 = vmatprep.subr.mxu0 0.0
          %549 = vmatpush1.msra.mxu0 0.0
          %550 = vmatprep.subr.mxu0 0.0
          %551 = vmatpush1.msra.mxu0 0.0
          %552 = vmatprep.subr.mxu0 0.0
          %553 = vmatpush1.msra.mxu0 0.0
          %554 = vmatprep.subr.mxu0 0.0
          %555 = vmatpush1.msra.mxu0 0.0
          %556 = vmatprep.subr.mxu0 0.0
          %557 = vmatpush1.msra.mxu0 0.0
          %558 = vmatprep.subr.mxu0 0.0
          %559 = vmatpush1.msra.mxu0 0.0
          %560 = vmatprep.subr.mxu0 0.0
          %561 = vmatpush1.msra.mxu0 0.0
          %562 = vmatprep.subr.mxu0 0.0
          %563 = vmatpush1.msra.mxu0 0.0
          %564 = vmatprep.subr.mxu0 0.0
          %565 = vmatpush1.msra.mxu0 0.0
          %566 = vmatprep.subr.mxu0 0.0
          %567 = vmatpush1.msra.mxu0 0.0
          %568 = vmatprep.subr.mxu0 0.0
          %569 = vmatpush1.msra.mxu0 0.0
          %570 = vmatprep.subr.mxu0 0.0
          %571 = vmatpush1.msra.mxu0 0.0
          %572 = vmatprep.subr.mxu0 0.0
          %573 = vmatpush1.msra.mxu0 0.0
          %574 = vmatprep.subr.mxu0 0.0
          %575 = vmatpush1.msra.mxu0 0.0
          %576 = vmatprep.subr.mxu0 0.0
          %577 = vmatpush1.msra.mxu0 0.0
          %578 = vmatprep.subr.mxu0 0.0
          %579 = vmatpush1.msra.mxu0 0.0
          %580 = vmatprep.subr.mxu0 0.0
          %581 = vmatpush1.msra.mxu0 0.0
          %582 = vmatprep.subr.mxu0 0.0
          %583 = vmatpush1.msra.mxu0 0.0
          %584 = vmatprep.mubr.f32.mxu0 0.0
          %585 = vmatmul.mubr.f32.gmra.mrb[0].mxu0 %v437
          %v586 = vpop.f32.mrb[0].mxu0
          %v587 = vadd.f32 %v518, %v586
          %v588 = vpop.f32.mrb[0].mxu0
          %589 = vdwg.mxu0
          %590 = vst.msk [vmem:[#allocation2] sm:$0xff] %vm435, %v506
          %591 = vst.msk [vmem:[#allocation3] sm:$0xff] %vm435, %v587
          %v592 = vsel %vm435, %v423, 0.0
          %593 = vadd.xlane.f32.xlu0 %v592
          %v594 = vpop.xlane.xlu0 %593
          %vm595 = vcmp.ne.f32.partialorder %v594, 0.0
          %v596 = vsel %vm595, 1, 0
          %v597 = vcvt.s32.f32 %v596
          %598 = vxpose.xlu0.b32.start [1/16] %v597, 128
          %599 = vxpose.xlu0.b32.cont [2/16] 0.0, 128
          %600 = vxpose.xlu0.b32.cont [3/16] 0.0, 128
          %601 = vxpose.xlu0.b32.cont [4/16] 0.0, 128
          %602 = vxpose.xlu0.b32.cont [5/16] 0.0, 128
          %603 = vxpose.xlu0.b32.cont [6/16] 0.0, 128
          %604 = vxpose.xlu0.b32.cont [7/16] 0.0, 128
          %605 = vxpose.xlu0.b32.cont [8/16] 0.0, 128
          %606 = vxpose.xlu0.b32.cont [9/16] 0.0, 128
          %607 = vxpose.xlu0.b32.cont [10/16] 0.0, 128
          %608 = vxpose.xlu0.b32.cont [11/16] 0.0, 128
          %609 = vxpose.xlu0.b32.cont [12/16] 0.0, 128
          %610 = vxpose.xlu0.b32.cont [13/16] 0.0, 128
          %611 = vxpose.xlu0.b32.cont [14/16] 0.0, 128
          %612 = vxpose.xlu0.b32.cont [15/16] 0.0, 128
          %613 = vxpose.xlu0.b32.end [16/16] 0.0, 128
          %v614 = vpop.trf.xlu0
          %v615 = vpop.trf.xlu0
          %v616 = vpop.trf.xlu0
          %v617 = vpop.trf.xlu0
          %v618 = vpop.trf.xlu0
          %v619 = vpop.trf.xlu0
          %v620 = vpop.trf.xlu0
          %v621 = vpop.trf.xlu0
          %v622 = vpop.trf.xlu0
          %v623 = vpop.trf.xlu0
          %v624 = vpop.trf.xlu0
          %v625 = vpop.trf.xlu0
          %v626 = vpop.trf.xlu0
          %v627 = vpop.trf.xlu0
          %v628 = vpop.trf.xlu0
          %v629 = vpop.trf.xlu0
          %vm630 = vcmask 57344
          %631 = vst.msk [vmem:[#allocation4] sm:$0x1] %vm630, %v614
        $region76: #{tpu_custom_call.1} parent=51 // pred_fallthru
          _
        %v632 = vld [vmem:[#allocation11] sm:$0xff]
        %v633 = vld [vmem:[#allocation11 + $0x8] sm:$0xff]
        %v634 = vld [vmem:[#allocation11 + $0x10] sm:$0xff]
        %v635 = vld [vmem:[#allocation11 + $0x18] sm:$0xff]
        %v636 = vld [vmem:[%s5] sm:$0x1]
        %v638 = vlaneseq
        %v639 = vshrl.u32 %v638, 7
        %v640 = vsub.s32 0, %v639
        %v641 = vrot.slane %v636, %v640
        %vm643 = vcmask 261120
        %v645 = vsel %vm643, %v418, 0
        %647 = vmatprep.subr.mxu0 0.0
        %648 = vmatpush1.msra.mxu0 %v632
        %649 = vmatprep.subr.mxu0 0.0
        %650 = vmatpush1.msra.mxu0 %v633
        %651 = vmatprep.subr.mxu0 0.0
        %652 = vmatpush1.msra.mxu0 %v634
        %653 = vmatprep.subr.mxu0 0.0
        %654 = vmatpush1.msra.mxu0 %v635
        %655 = vmatprep.subr.mxu0 0.0
        %656 = vmatpush1.msra.mxu0 0.0
        %657 = vmatprep.subr.mxu0 0.0
        %658 = vmatpush1.msra.mxu0 0.0
        %659 = vmatprep.subr.mxu0 0.0
        %660 = vmatpush1.msra.mxu0 0.0
        %661 = vmatprep.subr.mxu0 0.0
        %662 = vmatpush1.msra.mxu0 0.0
        %663 = vmatprep.subr.mxu0 0.0
        %664 = vmatpush1.msra.mxu0 0.0
        %665 = vmatprep.subr.mxu0 0.0
        %666 = vmatpush1.msra.mxu0 0.0
        %667 = vmatprep.subr.mxu0 0.0
        %668 = vmatpush1.msra.mxu0 0.0
        %669 = vmatprep.subr.mxu0 0.0
        %670 = vmatpush1.msra.mxu0 0.0
        %671 = vmatprep.subr.mxu0 0.0
        %672 = vmatpush1.msra.mxu0 0.0
        %673 = vmatprep.subr.mxu0 0.0
        %674 = vmatpush1.msra.mxu0 0.0
        %675 = vmatprep.subr.mxu0 0.0
        %676 = vmatpush1.msra.mxu0 0.0
        %677 = vmatprep.subr.mxu0 0.0
        %678 = vmatpush1.msra.mxu0 0.0
        %679 = vmatprep.subr.mxu0 0.0
        %680 = vmatpush1.msra.mxu0 0.0
        %681 = vmatprep.subr.mxu0 0.0
        %682 = vmatpush1.msra.mxu0 0.0
        %683 = vmatprep.subr.mxu0 0.0
        %684 = vmatpush1.msra.mxu0 0.0
        %685 = vmatprep.subr.mxu0 0.0
        %686 = vmatpush1.msra.mxu0 0.0
        %687 = vmatprep.subr.mxu0 0.0
        %688 = vmatpush1.msra.mxu0 0.0
        %689 = vmatprep.subr.mxu0 0.0
        %690 = vmatpush1.msra.mxu0 0.0
        %691 = vmatprep.subr.mxu0 0.0
        %692 = vmatpush1.msra.mxu0 0.0
        %693 = vmatprep.subr.mxu0 0.0
        %694 = vmatpush1.msra.mxu0 0.0
        %695 = vmatprep.subr.mxu0 0.0
        %696 = vmatpush1.msra.mxu0 0.0
        %697 = vmatprep.subr.mxu0 0.0
        %698 = vmatpush1.msra.mxu0 0.0
        %699 = vmatprep.subr.mxu0 0.0
        %700 = vmatpush1.msra.mxu0 0.0
        %701 = vmatprep.subr.mxu0 0.0
        %702 = vmatpush1.msra.mxu0 0.0
        %703 = vmatprep.subr.mxu0 0.0
        %704 = vmatpush1.msra.mxu0 0.0
        %705 = vmatprep.subr.mxu0 0.0
        %706 = vmatpush1.msra.mxu0 0.0
        %707 = vmatprep.subr.mxu0 0.0
        %708 = vmatpush1.msra.mxu0 0.0
        %709 = vmatprep.subr.mxu0 0.0
        %710 = vmatpush1.msra.mxu0 0.0
        %711 = vmatprep.mubr.f32.mxu0 0.0
        %712 = vmatmul.mubr.f32.gmra.mrb[0].mxu0 %v645
        %v713 = vpop.f32.mrb[0].mxu0
        %v714 = vadd.f32 %v641, %v713
        %v715 = vpop.f32.mrb[0].mxu0
        %716 = vdwg.mxu0
        %s717 = smul.u32 %s34, 8
        %v718 = vlaneseq
        %v719 = vshrl.u32 %v718, 7
        %v720 = vstv %s717
        %v721 = vadd.s32 %v720, %v719
        %v722 = vlaneseq
        %v723 = vand.u32 %v722, 127
        %vm724 = vcmp.le.s32.totalorder %v723, %v721
        %v725 = vld [vmem:[#allocation4] sm:$0x1]
        %vm726 = vcmp.ne.f32.partialorder %v725, 0.0
        %v727 = vsel %vm726, 1, 0
        %v728 = vlaneseq
        %v729 = vshrl.u32 %v728, 7
        %v730 = vsub.s32 0, %v729
        %v731 = vrot.slane %v727, %v730
        %vm732 = vcmp.eq.s32.totalorder %v731, 1
        %vm733 = vmand %vm724, %vm732
        %v734 = vsel %vm643, %v418, 0.0
        %735 = vadd.xlane.f32.xlu0 %v734
        %v736 = vpop.xlane.xlu0 %735
        %vm737 = vcmp.ne.f32.partialorder %v736, 0.0
        %v738 = vsel %vm737, 1, 0
        %v739 = vcvt.s32.f32 %v738
        %v740 = vld [vmem:[#allocation2] sm:$0xff]
        %v741 = vld [vmem:[#allocation3] sm:$0xff]
        %vm742 = vcmask 64512
        %v744 = vsel %vm742, %v714, 0
        %v747 = vsel %vm742, %v740, 0
        %749 = vmatprep.subr.mxu0 0.0
        %750 = vmatpush1.xpose.msra.mxu0 %v747
        %751 = vmatprep.subr.mxu0 0.0
        %752 = vmatpush1.xpose.msra.mxu0 0.0
        %753 = vmatprep.subr.mxu0 0.0
        %754 = vmatpush1.xpose.msra.mxu0 0.0
        %755 = vmatprep.subr.mxu0 0.0
        %756 = vmatpush1.xpose.msra.mxu0 0.0
        %757 = vmatprep.subr.mxu0 0.0
        %758 = vmatpush1.xpose.msra.mxu0 0.0
        %759 = vmatprep.subr.mxu0 0.0
        %760 = vmatpush1.xpose.msra.mxu0 0.0
        %761 = vmatprep.subr.mxu0 0.0
        %762 = vmatpush1.xpose.msra.mxu0 0.0
        %763 = vmatprep.subr.mxu0 0.0
        %764 = vmatpush1.xpose.msra.mxu0 0.0
        %765 = vmatprep.subr.mxu0 0.0
        %766 = vmatpush1.xpose.msra.mxu0 0.0
        %767 = vmatprep.subr.mxu0 0.0
        %768 = vmatpush1.xpose.msra.mxu0 0.0
        %769 = vmatprep.subr.mxu0 0.0
        %770 = vmatpush1.xpose.msra.mxu0 0.0
        %771 = vmatprep.subr.mxu0 0.0
        %772 = vmatpush1.xpose.msra.mxu0 0.0
        %773 = vmatprep.subr.mxu0 0.0
        %774 = vmatpush1.xpose.msra.mxu0 0.0
        %775 = vmatprep.subr.mxu0 0.0
        %776 = vmatpush1.xpose.msra.mxu0 0.0
        %777 = vmatprep.subr.mxu0 0.0
        %778 = vmatpush1.xpose.msra.mxu0 0.0
        %779 = vmatprep.subr.mxu0 0.0
        %780 = vmatpush1.xpose.msra.mxu0 0.0
        %781 = vmatprep.subr.mxu0 0.0
        %782 = vmatpush1.xpose.msra.mxu0 0.0
        %783 = vmatprep.subr.mxu0 0.0
        %784 = vmatpush1.xpose.msra.mxu0 0.0
        %785 = vmatprep.subr.mxu0 0.0
        %786 = vmatpush1.xpose.msra.mxu0 0.0
        %787 = vmatprep.subr.mxu0 0.0
        %788 = vmatpush1.xpose.msra.mxu0 0.0
        %789 = vmatprep.subr.mxu0 0.0
        %790 = vmatpush1.xpose.msra.mxu0 0.0
        %791 = vmatprep.subr.mxu0 0.0
        %792 = vmatpush1.xpose.msra.mxu0 0.0
        %793 = vmatprep.subr.mxu0 0.0
        %794 = vmatpush1.xpose.msra.mxu0 0.0
        %795 = vmatprep.subr.mxu0 0.0
        %796 = vmatpush1.xpose.msra.mxu0 0.0
        %797 = vmatprep.subr.mxu0 0.0
        %798 = vmatpush1.xpose.msra.mxu0 0.0
        %799 = vmatprep.subr.mxu0 0.0
        %800 = vmatpush1.xpose.msra.mxu0 0.0
        %801 = vmatprep.subr.mxu0 0.0
        %802 = vmatpush1.xpose.msra.mxu0 0.0
        %803 = vmatprep.subr.mxu0 0.0
        %804 = vmatpush1.xpose.msra.mxu0 0.0
        %805 = vmatprep.subr.mxu0 0.0
        %806 = vmatpush1.xpose.msra.mxu0 0.0
        %807 = vmatprep.subr.mxu0 0.0
        %808 = vmatpush1.xpose.msra.mxu0 0.0
        %809 = vmatprep.subr.mxu0 0.0
        %810 = vmatpush1.xpose.msra.mxu0 0.0
        %811 = vmatprep.subr.mxu0 0.0
        %812 = vmatpush1.xpose.msra.mxu0 0.0
        %813 = vmatprep.mubr.f32.mxu0 0.0
        %814 = vmatmul.mubr.f32.gmra.mrb[0].mxu0 %v744
        %v815 = vpop.f32.mrb[0].mxu0
        %v816 = vadd.f32 0.0, %v815
        %v817 = vpop.f32.mrb[0].mxu0
        %818 = vdwg.mxu0
        %v819 = vsel %vm733, %v816, -4.2949673e+09
        %v820 = vsel %vm742, %v819, -inf
        %821 = vmax.xlane.f32.xlu0 %v820
        %v822 = vpop.xlane.xlu0 %821
        %v823 = vsub.f32 %v819, %v822
        %v824 = vmul.f32 %v823, 1.442695
        %v825 = vpow.pop %v824
        %v826 = vsel %vm742, %v825, 0.0
        %827 = vadd.xlane.f32.xlu0 %v826
        %v828 = vpop.xlane.xlu0 %827
        %v830 = vsel %vm742, %v825, 0
        %832 = vmatprep.subr.mxu0 0.0
        %833 = vmatpush1.msra.mxu0 %v741
        %834 = vmatprep.subr.mxu0 0.0
        %835 = vmatpush1.msra.mxu0 0.0
        %836 = vmatprep.subr.mxu0 0.0
        %837 = vmatpush1.msra.mxu0 0.0
        %838 = vmatprep.subr.mxu0 0.0
        %839 = vmatpush1.msra.mxu0 0.0
        %840 = vmatprep.subr.mxu0 0.0
        %841 = vmatpush1.msra.mxu0 0.0
        %842 = vmatprep.subr.mxu0 0.0
        %843 = vmatpush1.msra.mxu0 0.0
        %844 = vmatprep.subr.mxu0 0.0
        %845 = vmatpush1.msra.mxu0 0.0
        %846 = vmatprep.subr.mxu0 0.0
        %847 = vmatpush1.msra.mxu0 0.0
        %848 = vmatprep.subr.mxu0 0.0
        %849 = vmatpush1.msra.mxu0 0.0
        %850 = vmatprep.subr.mxu0 0.0
        %851 = vmatpush1.msra.mxu0 0.0
        %852 = vmatprep.subr.mxu0 0.0
        %853 = vmatpush1.msra.mxu0 0.0
        %854 = vmatprep.subr.mxu0 0.0
        %855 = vmatpush1.msra.mxu0 0.0
        %856 = vmatprep.subr.mxu0 0.0
        %857 = vmatpush1.msra.mxu0 0.0
        %858 = vmatprep.subr.mxu0 0.0
        %859 = vmatpush1.msra.mxu0 0.0
        %860 = vmatprep.subr.mxu0 0.0
        %861 = vmatpush1.msra.mxu0 0.0
        %862 = vmatprep.subr.mxu0 0.0
        %863 = vmatpush1.msra.mxu0 0.0
        %864 = vmatprep.subr.mxu0 0.0
        %865 = vmatpush1.msra.mxu0 0.0
        %866 = vmatprep.subr.mxu0 0.0
        %867 = vmatpush1.msra.mxu0 0.0
        %868 = vmatprep.subr.mxu0 0.0
        %869 = vmatpush1.msra.mxu0 0.0
        %870 = vmatprep.subr.mxu0 0.0
        %871 = vmatpush1.msra.mxu0 0.0
        %872 = vmatprep.subr.mxu0 0.0
        %873 = vmatpush1.msra.mxu0 0.0
        %874 = vmatprep.subr.mxu0 0.0
        %875 = vmatpush1.msra.mxu0 0.0
        %876 = vmatprep.subr.mxu0 0.0
        %877 = vmatpush1.msra.mxu0 0.0
        %878 = vmatprep.subr.mxu0 0.0
        %879 = vmatpush1.msra.mxu0 0.0
        %880 = vmatprep.subr.mxu0 0.0
        %881 = vmatpush1.msra.mxu0 0.0
        %882 = vmatprep.subr.mxu0 0.0
        %883 = vmatpush1.msra.mxu0 0.0
        %884 = vmatprep.subr.mxu0 0.0
        %885 = vmatpush1.msra.mxu0 0.0
        %886 = vmatprep.subr.mxu0 0.0
        %887 = vmatpush1.msra.mxu0 0.0
        %888 = vmatprep.subr.mxu0 0.0
        %889 = vmatpush1.msra.mxu0 0.0
        %890 = vmatprep.subr.mxu0 0.0
        %891 = vmatpush1.msra.mxu0 0.0
        %892 = vmatprep.subr.mxu0 0.0
        %893 = vmatpush1.msra.mxu0 0.0
        %894 = vmatprep.subr.mxu0 0.0
        %895 = vmatpush1.msra.mxu0 0.0
        %896 = vmatprep.mubr.f32.mxu0 0.0
        %897 = vmatmul.mubr.f32.gmra.mrb[0].mxu0 %v830
        %v898 = vpop.f32.mrb[0].mxu0
        %v899 = vadd.f32 0.0, %v898
        %v900 = vpop.f32.mrb[0].mxu0
        %901 = vdwg.mxu0
        %v902 = vrcp.pop %v828
        %v903 = vmul.f32 %v739, %v902
        %v904 = vmul.f32 %v899, %v903
        %v905 = vadd.f32 %v904, %v418
        %906 = vst.msk [vmem:[#allocation5] sm:$0xff] %vm742, %v905
        %v907 = vld [vmem:[#allocation2] sm:$0xff]
        %v908 = vld [vmem:[#allocation3] sm:$0xff]
        %909 = vrot.lane.b32.xlu0 %v714, 120
        %v910 = vpop.permute.xlu0 %909
        %912 = vrot.lane.b32.xlu0 %v907, 120
        %v913 = vpop.permute.xlu0 %912
        %v914 = vsel %vm742, %v910, 0
        %v916 = vsel %vm742, %v913, 0
        %918 = vmatprep.subr.mxu0 0.0
        %919 = vmatpush1.xpose.msra.mxu0 %v916
        %920 = vmatprep.subr.mxu0 0.0
        %921 = vmatpush1.xpose.msra.mxu0 0.0
        %922 = vmatprep.subr.mxu0 0.0
        %923 = vmatpush1.xpose.msra.mxu0 0.0
        %924 = vmatprep.subr.mxu0 0.0
        %925 = vmatpush1.xpose.msra.mxu0 0.0
        %926 = vmatprep.subr.mxu0 0.0
        %927 = vmatpush1.xpose.msra.mxu0 0.0
        %928 = vmatprep.subr.mxu0 0.0
        %929 = vmatpush1.xpose.msra.mxu0 0.0
        %930 = vmatprep.subr.mxu0 0.0
        %931 = vmatpush1.xpose.msra.mxu0 0.0
        %932 = vmatprep.subr.mxu0 0.0
        %933 = vmatpush1.xpose.msra.mxu0 0.0
        %934 = vmatprep.subr.mxu0 0.0
        %935 = vmatpush1.xpose.msra.mxu0 0.0
        %936 = vmatprep.subr.mxu0 0.0
        %937 = vmatpush1.xpose.msra.mxu0 0.0
        %938 = vmatprep.subr.mxu0 0.0
        %939 = vmatpush1.xpose.msra.mxu0 0.0
        %940 = vmatprep.subr.mxu0 0.0
        %941 = vmatpush1.xpose.msra.mxu0 0.0
        %942 = vmatprep.subr.mxu0 0.0
        %943 = vmatpush1.xpose.msra.mxu0 0.0
        %944 = vmatprep.subr.mxu0 0.0
        %945 = vmatpush1.xpose.msra.mxu0 0.0
        %946 = vmatprep.subr.mxu0 0.0
        %947 = vmatpush1.xpose.msra.mxu0 0.0
        %948 = vmatprep.subr.mxu0 0.0
        %949 = vmatpush1.xpose.msra.mxu0 0.0
        %950 = vmatprep.subr.mxu0 0.0
        %951 = vmatpush1.xpose.msra.mxu0 0.0
        %952 = vmatprep.subr.mxu0 0.0
        %953 = vmatpush1.xpose.msra.mxu0 0.0
        %954 = vmatprep.subr.mxu0 0.0
        %955 = vmatpush1.xpose.msra.mxu0 0.0
        %956 = vmatprep.subr.mxu0 0.0
        %957 = vmatpush1.xpose.msra.mxu0 0.0
        %958 = vmatprep.subr.mxu0 0.0
        %959 = vmatpush1.xpose.msra.mxu0 0.0
        %960 = vmatprep.subr.mxu0 0.0
        %961 = vmatpush1.xpose.msra.mxu0 0.0
        %962 = vmatprep.subr.mxu0 0.0
        %963 = vmatpush1.xpose.msra.mxu0 0.0
        %964 = vmatprep.subr.mxu0 0.0
        %965 = vmatpush1.xpose.msra.mxu0 0.0
        %966 = vmatprep.subr.mxu0 0.0
        %967 = vmatpush1.xpose.msra.mxu0 0.0
        %968 = vmatprep.subr.mxu0 0.0
        %969 = vmatpush1.xpose.msra.mxu0 0.0
        %970 = vmatprep.subr.mxu0 0.0
        %971 = vmatpush1.xpose.msra.mxu0 0.0
        %972 = vmatprep.subr.mxu0 0.0
        %973 = vmatpush1.xpose.msra.mxu0 0.0
        %974 = vmatprep.subr.mxu0 0.0
        %975 = vmatpush1.xpose.msra.mxu0 0.0
        %976 = vmatprep.subr.mxu0 0.0
        %977 = vmatpush1.xpose.msra.mxu0 0.0
        %978 = vmatprep.subr.mxu0 0.0
        %979 = vmatpush1.xpose.msra.mxu0 0.0
        %980 = vmatprep.subr.mxu0 0.0
        %981 = vmatpush1.xpose.msra.mxu0 0.0
        %982 = vmatprep.mubr.f32.mxu0 0.0
        %983 = vmatmul.mubr.f32.gmra.mrb[0].mxu0 %v914
        %v984 = vpop.f32.mrb[0].mxu0
        %v985 = vadd.f32 0.0, %v984
        %v986 = vpop.f32.mrb[0].mxu0
        %987 = vdwg.mxu0
        %v988 = vsel %vm733, %v985, -4.2949673e+09
        %v989 = vsel %vm742, %v988, -inf
        %990 = vmax.xlane.f32.xlu0 %v989
        %v991 = vpop.xlane.xlu0 %990
        %v992 = vsub.f32 %v988, %v991
        %v993 = vmul.f32 %v992, 1.442695
        %v994 = vpow.pop %v993
        %v995 = vsel %vm742, %v994, 0.0
        %996 = vadd.xlane.f32.xlu0 %v995
        %v997 = vpop.xlane.xlu0 %996
        %999 = vrot.lane.b32.xlu0 %v908, 120
        %v1000 = vpop.permute.xlu0 %999
        %v1003 = vsel %vm742, %v994, 0
        %1005 = vmatprep.subr.mxu0 0.0
        %1006 = vmatpush1.msra.mxu0 %v1000
        %1007 = vmatprep.subr.mxu0 0.0
        %1008 = vmatpush1.msra.mxu0 0.0
        %1009 = vmatprep.subr.mxu0 0.0
        %1010 = vmatpush1.msra.mxu0 0.0
        %1011 = vmatprep.subr.mxu0 0.0
        %1012 = vmatpush1.msra.mxu0 0.0
        %1013 = vmatprep.subr.mxu0 0.0
        %1014 = vmatpush1.msra.mxu0 0.0
        %1015 = vmatprep.subr.mxu0 0.0
        %1016 = vmatpush1.msra.mxu0 0.0
        %1017 = vmatprep.subr.mxu0 0.0
        %1018 = vmatpush1.msra.mxu0 0.0
        %1019 = vmatprep.subr.mxu0 0.0
        %1020 = vmatpush1.msra.mxu0 0.0
        %1021 = vmatprep.subr.mxu0 0.0
        %1022 = vmatpush1.msra.mxu0 0.0
        %1023 = vmatprep.subr.mxu0 0.0
        %1024 = vmatpush1.msra.mxu0 0.0
        %1025 = vmatprep.subr.mxu0 0.0
        %1026 = vmatpush1.msra.mxu0 0.0
        %1027 = vmatprep.subr.mxu0 0.0
        %1028 = vmatpush1.msra.mxu0 0.0
        %1029 = vmatprep.subr.mxu0 0.0
        %1030 = vmatpush1.msra.mxu0 0.0
        %1031 = vmatprep.subr.mxu0 0.0
        %1032 = vmatpush1.msra.mxu0 0.0
        %1033 = vmatprep.subr.mxu0 0.0
        %1034 = vmatpush1.msra.mxu0 0.0
        %1035 = vmatprep.subr.mxu0 0.0
        %1036 = vmatpush1.msra.mxu0 0.0
        %1037 = vmatprep.subr.mxu0 0.0
        %1038 = vmatpush1.msra.mxu0 0.0
        %1039 = vmatprep.subr.mxu0 0.0
        %1040 = vmatpush1.msra.mxu0 0.0
        %1041 = vmatprep.subr.mxu0 0.0
        %1042 = vmatpush1.msra.mxu0 0.0
        %1043 = vmatprep.subr.mxu0 0.0
        %1044 = vmatpush1.msra.mxu0 0.0
        %1045 = vmatprep.subr.mxu0 0.0
        %1046 = vmatpush1.msra.mxu0 0.0
        %1047 = vmatprep.subr.mxu0 0.0
        %1048 = vmatpush1.msra.mxu0 0.0
        %1049 = vmatprep.subr.mxu0 0.0
        %1050 = vmatpush1.msra.mxu0 0.0
        %1051 = vmatprep.subr.mxu0 0.0
        %1052 = vmatpush1.msra.mxu0 0.0
        %1053 = vmatprep.subr.mxu0 0.0
        %1054 = vmatpush1.msra.mxu0 0.0
        %1055 = vmatprep.subr.mxu0 0.0
        %1056 = vmatpush1.msra.mxu0 0.0
        %1057 = vmatprep.subr.mxu0 0.0
        %1058 = vmatpush1.msra.mxu0 0.0
        %1059 = vmatprep.subr.mxu0 0.0
        %1060 = vmatpush1.msra.mxu0 0.0
        %1061 = vmatprep.subr.mxu0 0.0
        %1062 = vmatpush1.msra.mxu0 0.0
        %1063 = vmatprep.subr.mxu0 0.0
        %1064 = vmatpush1.msra.mxu0 0.0
        %1065 = vmatprep.subr.mxu0 0.0
        %1066 = vmatpush1.msra.mxu0 0.0
        %1067 = vmatprep.subr.mxu0 0.0
        %1068 = vmatpush1.msra.mxu0 0.0
        %1069 = vmatprep.mubr.f32.mxu0 0.0
        %1070 = vmatmul.mubr.f32.gmra.mrb[0].mxu0 %v1003
        %v1071 = vpop.f32.mrb[0].mxu0
        %v1072 = vadd.f32 0.0, %v1071
        %v1073 = vpop.f32.mrb[0].mxu0
        %1074 = vdwg.mxu0
        %v1075 = vrcp.pop %v997
        %v1076 = vmul.f32 %v739, %v1075
        %v1077 = vmul.f32 %v1072, %v1076
        %1078 = vrot.lane.b32.xlu0 %v418, 120
        %v1079 = vpop.permute.xlu0 %1078
        %v1081 = vadd.f32 %v1077, %v1079
        %1083 = vrot.lane.b32.xlu0 %v1081, 8
        %v1084 = vpop.permute.xlu0 %1083
        %vm1086 = vcmask 130112
        %1087 = vst.msk [vmem:[#allocation5] sm:$0xff] %vm1086, %v1084
        %v1088 = vld [vmem:[#allocation2] sm:$0xff]
        %v1089 = vld [vmem:[#allocation3] sm:$0xff]
        %1090 = vrot.lane.b32.xlu0 %v714, 112
        %v1091 = vpop.permute.xlu0 %1090
        %1093 = vrot.lane.b32.xlu0 %v1088, 112
        %v1094 = vpop.permute.xlu0 %1093
        %v1095 = vsel %vm742, %v1091, 0
        %v1097 = vsel %vm742, %v1094, 0
        %1099 = vmatprep.subr.mxu0 0.0
        %1100 = vmatpush1.xpose.msra.mxu0 %v1097
        %1101 = vmatprep.subr.mxu0 0.0
        %1102 = vmatpush1.xpose.msra.mxu0 0.0
        %1103 = vmatprep.subr.mxu0 0.0
        %1104 = vmatpush1.xpose.msra.mxu0 0.0
        %1105 = vmatprep.subr.mxu0 0.0
        %1106 = vmatpush1.xpose.msra.mxu0 0.0
        %1107 = vmatprep.subr.mxu0 0.0
        %1108 = vmatpush1.xpose.msra.mxu0 0.0
        %1109 = vmatprep.subr.mxu0 0.0
        %1110 = vmatpush1.xpose.msra.mxu0 0.0
        %1111 = vmatprep.subr.mxu0 0.0
        %1112 = vmatpush1.xpose.msra.mxu0 0.0
        %1113 = vmatprep.subr.mxu0 0.0
        %1114 = vmatpush1.xpose.msra.mxu0 0.0
        %1115 = vmatprep.subr.mxu0 0.0
        %1116 = vmatpush1.xpose.msra.mxu0 0.0
        %1117 = vmatprep.subr.mxu0 0.0
        %1118 = vmatpush1.xpose.msra.mxu0 0.0
        %1119 = vmatprep.subr.mxu0 0.0
        %1120 = vmatpush1.xpose.msra.mxu0 0.0
        %1121 = vmatprep.subr.mxu0 0.0
        %1122 = vmatpush1.xpose.msra.mxu0 0.0
        %1123 = vmatprep.subr.mxu0 0.0
        %1124 = vmatpush1.xpose.msra.mxu0 0.0
        %1125 = vmatprep.subr.mxu0 0.0
        %1126 = vmatpush1.xpose.msra.mxu0 0.0
        %1127 = vmatprep.subr.mxu0 0.0
        %1128 = vmatpush1.xpose.msra.mxu0 0.0
        %1129 = vmatprep.subr.mxu0 0.0
        %1130 = vmatpush1.xpose.msra.mxu0 0.0
        %1131 = vmatprep.subr.mxu0 0.0
        %1132 = vmatpush1.xpose.msra.mxu0 0.0
        %1133 = vmatprep.subr.mxu0 0.0
        %1134 = vmatpush1.xpose.msra.mxu0 0.0
        %1135 = vmatprep.subr.mxu0 0.0
        %1136 = vmatpush1.xpose.msra.mxu0 0.0
        %1137 = vmatprep.subr.mxu0 0.0
        %1138 = vmatpush1.xpose.msra.mxu0 0.0
        %1139 = vmatprep.subr.mxu0 0.0
        %1140 = vmatpush1.xpose.msra.mxu0 0.0
        %1141 = vmatprep.subr.mxu0 0.0
        %1142 = vmatpush1.xpose.msra.mxu0 0.0
        %1143 = vmatprep.subr.mxu0 0.0
        %1144 = vmatpush1.xpose.msra.mxu0 0.0
        %1145 = vmatprep.subr.mxu0 0.0
        %1146 = vmatpush1.xpose.msra.mxu0 0.0
        %1147 = vmatprep.subr.mxu0 0.0
        %1148 = vmatpush1.xpose.msra.mxu0 0.0
        %1149 = vmatprep.subr.mxu0 0.0
        %1150 = vmatpush1.xpose.msra.mxu0 0.0
        %1151 = vmatprep.subr.mxu0 0.0
        %1152 = vmatpush1.xpose.msra.mxu0 0.0
        %1153 = vmatprep.subr.mxu0 0.0
        %1154 = vmatpush1.xpose.msra.mxu0 0.0
        %1155 = vmatprep.subr.mxu0 0.0
        %1156 = vmatpush1.xpose.msra.mxu0 0.0
        %1157 = vmatprep.subr.mxu0 0.0
        %1158 = vmatpush1.xpose.msra.mxu0 0.0
        %1159 = vmatprep.subr.mxu0 0.0
        %1160 = vmatpush1.xpose.msra.mxu0 0.0
        %1161 = vmatprep.subr.mxu0 0.0
        %1162 = vmatpush1.xpose.msra.mxu0 0.0
        %1163 = vmatprep.mubr.f32.mxu0 0.0
        %1164 = vmatmul.mubr.f32.gmra.mrb[0].mxu0 %v1095
        %v1165 = vpop.f32.mrb[0].mxu0
        %v1166 = vadd.f32 0.0, %v1165
        %v1167 = vpop.f32.mrb[0].mxu0
        %1168 = vdwg.mxu0
        %v1169 = vsel %vm733, %v1166, -4.2949673e+09
        %v1170 = vsel %vm742, %v1169, -inf
        %1171 = vmax.xlane.f32.xlu0 %v1170
        %v1172 = vpop.xlane.xlu0 %1171
        %v1173 = vsub.f32 %v1169, %v1172
        %v1174 = vmul.f32 %v1173, 1.442695
        %v1175 = vpow.pop %v1174
        %v1176 = vsel %vm742, %v1175, 0.0
        %1177 = vadd.xlane.f32.xlu0 %v1176
        %v1178 = vpop.xlane.xlu0 %1177
        %1180 = vrot.lane.b32.xlu0 %v1089, 112
        %v1181 = vpop.permute.xlu0 %1180
        %v1184 = vsel %vm742, %v1175, 0
        %1186 = vmatprep.subr.mxu0 0.0
        %1187 = vmatpush1.msra.mxu0 %v1181
        %1188 = vmatprep.subr.mxu0 0.0
        %1189 = vmatpush1.msra.mxu0 0.0
        %1190 = vmatprep.subr.mxu0 0.0
        %1191 = vmatpush1.msra.mxu0 0.0
        %1192 = vmatprep.subr.mxu0 0.0
        %1193 = vmatpush1.msra.mxu0 0.0
        %1194 = vmatprep.subr.mxu0 0.0
        %1195 = vmatpush1.msra.mxu0 0.0
        %1196 = vmatprep.subr.mxu0 0.0
        %1197 = vmatpush1.msra.mxu0 0.0
        %1198 = vmatprep.subr.mxu0 0.0
        %1199 = vmatpush1.msra.mxu0 0.0
        %1200 = vmatprep.subr.mxu0 0.0
        %1201 = vmatpush1.msra.mxu0 0.0
        %1202 = vmatprep.subr.mxu0 0.0
        %1203 = vmatpush1.msra.mxu0 0.0
        %1204 = vmatprep.subr.mxu0 0.0
        %1205 = vmatpush1.msra.mxu0 0.0
        %1206 = vmatprep.subr.mxu0 0.0
        %1207 = vmatpush1.msra.mxu0 0.0
        %1208 = vmatprep.subr.mxu0 0.0
        %1209 = vmatpush1.msra.mxu0 0.0
        %1210 = vmatprep.subr.mxu0 0.0
        %1211 = vmatpush1.msra.mxu0 0.0
        %1212 = vmatprep.subr.mxu0 0.0
        %1213 = vmatpush1.msra.mxu0 0.0
        %1214 = vmatprep.subr.mxu0 0.0
        %1215 = vmatpush1.msra.mxu0 0.0
        %1216 = vmatprep.subr.mxu0 0.0
        %1217 = vmatpush1.msra.mxu0 0.0
        %1218 = vmatprep.subr.mxu0 0.0
        %1219 = vmatpush1.msra.mxu0 0.0
        %1220 = vmatprep.subr.mxu0 0.0
        %1221 = vmatpush1.msra.mxu0 0.0
        %1222 = vmatprep.subr.mxu0 0.0
        %1223 = vmatpush1.msra.mxu0 0.0
        %1224 = vmatprep.subr.mxu0 0.0
        %1225 = vmatpush1.msra.mxu0 0.0
        %1226 = vmatprep.subr.mxu0 0.0
        %1227 = vmatpush1.msra.mxu0 0.0
        %1228 = vmatprep.subr.mxu0 0.0
        %1229 = vmatpush1.msra.mxu0 0.0
        %1230 = vmatprep.subr.mxu0 0.0
        %1231 = vmatpush1.msra.mxu0 0.0
        %1232 = vmatprep.subr.mxu0 0.0
        %1233 = vmatpush1.msra.mxu0 0.0
        %1234 = vmatprep.subr.mxu0 0.0
        %1235 = vmatpush1.msra.mxu0 0.0
        %1236 = vmatprep.subr.mxu0 0.0
        %1237 = vmatpush1.msra.mxu0 0.0
        %1238 = vmatprep.subr.mxu0 0.0
        %1239 = vmatpush1.msra.mxu0 0.0
        %1240 = vmatprep.subr.mxu0 0.0
        %1241 = vmatpush1.msra.mxu0 0.0
        %1242 = vmatprep.subr.mxu0 0.0
        %1243 = vmatpush1.msra.mxu0 0.0
        %1244 = vmatprep.subr.mxu0 0.0
        %1245 = vmatpush1.msra.mxu0 0.0
        %1246 = vmatprep.subr.mxu0 0.0
        %1247 = vmatpush1.msra.mxu0 0.0
        %1248 = vmatprep.subr.mxu0 0.0
        %1249 = vmatpush1.msra.mxu0 0.0
        %1250 = vmatprep.mubr.f32.mxu0 0.0
        %1251 = vmatmul.mubr.f32.gmra.mrb[0].mxu0 %v1184
        %v1252 = vpop.f32.mrb[0].mxu0
        %v1253 = vadd.f32 0.0, %v1252
        %v1254 = vpop.f32.mrb[0].mxu0
        %1255 = vdwg.mxu0
        %v1256 = vrcp.pop %v1178
        %v1257 = vmul.f32 %v739, %v1256
        %v1258 = vmul.f32 %v1253, %v1257
        %1259 = vrot.lane.b32.xlu0 %v418, 112
        %v1260 = vpop.permute.xlu0 %1259
        %v1262 = vadd.f32 %v1258, %v1260
        %1264 = vrot.lane.b32.xlu0 %v1262, 16
        %v1265 = vpop.permute.xlu0 %1264
        %vm1267 = vcmask 195712
        %1268 = vst.msk [vmem:[#allocation5] sm:$0xff] %vm1267, %v1265
        %v1269 = vld [vmem:[#allocation2] sm:$0xff]
        %v1270 = vld [vmem:[#allocation3] sm:$0xff]
        %1271 = vrot.lane.b32.xlu0 %v714, 104
        %v1272 = vpop.permute.xlu0 %1271
        %1274 = vrot.lane.b32.xlu0 %v1269, 104
        %v1275 = vpop.permute.xlu0 %1274
        %v1276 = vsel %vm742, %v1272, 0
        %v1278 = vsel %vm742, %v1275, 0
        %1280 = vmatprep.subr.mxu0 0.0
        %1281 = vmatpush1.xpose.msra.mxu0 %v1278
        %1282 = vmatprep.subr.mxu0 0.0
        %1283 = vmatpush1.xpose.msra.mxu0 0.0
        %1284 = vmatprep.subr.mxu0 0.0
        %1285 = vmatpush1.xpose.msra.mxu0 0.0
        %1286 = vmatprep.subr.mxu0 0.0
        %1287 = vmatpush1.xpose.msra.mxu0 0.0
        %1288 = vmatprep.subr.mxu0 0.0
        %1289 = vmatpush1.xpose.msra.mxu0 0.0
        %1290 = vmatprep.subr.mxu0 0.0
        %1291 = vmatpush1.xpose.msra.mxu0 0.0
        %1292 = vmatprep.subr.mxu0 0.0
        %1293 = vmatpush1.xpose.msra.mxu0 0.0
        %1294 = vmatprep.subr.mxu0 0.0
        %1295 = vmatpush1.xpose.msra.mxu0 0.0
        %1296 = vmatprep.subr.mxu0 0.0
        %1297 = vmatpush1.xpose.msra.mxu0 0.0
        %1298 = vmatprep.subr.mxu0 0.0
        %1299 = vmatpush1.xpose.msra.mxu0 0.0
        %1300 = vmatprep.subr.mxu0 0.0
        %1301 = vmatpush1.xpose.msra.mxu0 0.0
        %1302 = vmatprep.subr.mxu0 0.0
        %1303 = vmatpush1.xpose.msra.mxu0 0.0
        %1304 = vmatprep.subr.mxu0 0.0
        %1305 = vmatpush1.xpose.msra.mxu0 0.0
        %1306 = vmatprep.subr.mxu0 0.0
        %1307 = vmatpush1.xpose.msra.mxu0 0.0
        %1308 = vmatprep.subr.mxu0 0.0
        %1309 = vmatpush1.xpose.msra.mxu0 0.0
        %1310 = vmatprep.subr.mxu0 0.0
        %1311 = vmatpush1.xpose.msra.mxu0 0.0
        %1312 = vmatprep.subr.mxu0 0.0
        %1313 = vmatpush1.xpose.msra.mxu0 0.0
        %1314 = vmatprep.subr.mxu0 0.0
        %1315 = vmatpush1.xpose.msra.mxu0 0.0
        %1316 = vmatprep.subr.mxu0 0.0
        %1317 = vmatpush1.xpose.msra.mxu0 0.0
        %1318 = vmatprep.subr.mxu0 0.0
        %1319 = vmatpush1.xpose.msra.mxu0 0.0
        %1320 = vmatprep.subr.mxu0 0.0
        %1321 = vmatpush1.xpose.msra.mxu0 0.0
        %1322 = vmatprep.subr.mxu0 0.0
        %1323 = vmatpush1.xpose.msra.mxu0 0.0
        %1324 = vmatprep.subr.mxu0 0.0
        %1325 = vmatpush1.xpose.msra.mxu0 0.0
        %1326 = vmatprep.subr.mxu0 0.0
        %1327 = vmatpush1.xpose.msra.mxu0 0.0
        %1328 = vmatprep.subr.mxu0 0.0
        %1329 = vmatpush1.xpose.msra.mxu0 0.0
        %1330 = vmatprep.subr.mxu0 0.0
        %1331 = vmatpush1.xpose.msra.mxu0 0.0
        %1332 = vmatprep.subr.mxu0 0.0
        %1333 = vmatpush1.xpose.msra.mxu0 0.0
        %1334 = vmatprep.subr.mxu0 0.0
        %1335 = vmatpush1.xpose.msra.mxu0 0.0
        %1336 = vmatprep.subr.mxu0 0.0
        %1337 = vmatpush1.xpose.msra.mxu0 0.0
        %1338 = vmatprep.subr.mxu0 0.0
        %1339 = vmatpush1.xpose.msra.mxu0 0.0
        %1340 = vmatprep.subr.mxu0 0.0
        %1341 = vmatpush1.xpose.msra.mxu0 0.0
        %1342 = vmatprep.subr.mxu0 0.0
        %1343 = vmatpush1.xpose.msra.mxu0 0.0
        %1344 = vmatprep.mubr.f32.mxu0 0.0
        %1345 = vmatmul.mubr.f32.gmra.mrb[0].mxu0 %v1276
        %v1346 = vpop.f32.mrb[0].mxu0
        %v1347 = vadd.f32 0.0, %v1346
        %v1348 = vpop.f32.mrb[0].mxu0
        %1349 = vdwg.mxu0
        %v1350 = vsel %vm733, %v1347, -4.2949673e+09
        %v1351 = vsel %vm742, %v1350, -inf
        %1352 = vmax.xlane.f32.xlu0 %v1351
        %v1353 = vpop.xlane.xlu0 %1352
        %v1354 = vsub.f32 %v1350, %v1353
        %v1355 = vmul.f32 %v1354, 1.442695
        %v1356 = vpow.pop %v1355
        %v1357 = vsel %vm742, %v1356, 0.0
        %1358 = vadd.xlane.f32.xlu0 %v1357
        %v1359 = vpop.xlane.xlu0 %1358
        %1361 = vrot.lane.b32.xlu0 %v1270, 104
        %v1362 = vpop.permute.xlu0 %1361
        %v1365 = vsel %vm742, %v1356, 0
        %1367 = vmatprep.subr.mxu0 0.0
        %1368 = vmatpush1.msra.mxu0 %v1362
        %1369 = vmatprep.subr.mxu0 0.0
        %1370 = vmatpush1.msra.mxu0 0.0
        %1371 = vmatprep.subr.mxu0 0.0
        %1372 = vmatpush1.msra.mxu0 0.0
        %1373 = vmatprep.subr.mxu0 0.0
        %1374 = vmatpush1.msra.mxu0 0.0
        %1375 = vmatprep.subr.mxu0 0.0
        %1376 = vmatpush1.msra.mxu0 0.0
        %1377 = vmatprep.subr.mxu0 0.0
        %1378 = vmatpush1.msra.mxu0 0.0
        %1379 = vmatprep.subr.mxu0 0.0
        %1380 = vmatpush1.msra.mxu0 0.0
        %1381 = vmatprep.subr.mxu0 0.0
        %1382 = vmatpush1.msra.mxu0 0.0
        %1383 = vmatprep.subr.mxu0 0.0
        %1384 = vmatpush1.msra.mxu0 0.0
        %1385 = vmatprep.subr.mxu0 0.0
        %1386 = vmatpush1.msra.mxu0 0.0
        %1387 = vmatprep.subr.mxu0 0.0
        %1388 = vmatpush1.msra.mxu0 0.0
        %1389 = vmatprep.subr.mxu0 0.0
        %1390 = vmatpush1.msra.mxu0 0.0
        %1391 = vmatprep.subr.mxu0 0.0
        %1392 = vmatpush1.msra.mxu0 0.0
        %1393 = vmatprep.subr.mxu0 0.0
        %1394 = vmatpush1.msra.mxu0 0.0
        %1395 = vmatprep.subr.mxu0 0.0
        %1396 = vmatpush1.msra.mxu0 0.0
        %1397 = vmatprep.subr.mxu0 0.0
        %1398 = vmatpush1.msra.mxu0 0.0
        %1399 = vmatprep.subr.mxu0 0.0
        %1400 = vmatpush1.msra.mxu0 0.0
        %1401 = vmatprep.subr.mxu0 0.0
        %1402 = vmatpush1.msra.mxu0 0.0
        %1403 = vmatprep.subr.mxu0 0.0
        %1404 = vmatpush1.msra.mxu0 0.0
        %1405 = vmatprep.subr.mxu0 0.0
        %1406 = vmatpush1.msra.mxu0 0.0
        %1407 = vmatprep.subr.mxu0 0.0
        %1408 = vmatpush1.msra.mxu0 0.0
        %1409 = vmatprep.subr.mxu0 0.0
        %1410 = vmatpush1.msra.mxu0 0.0
        %1411 = vmatprep.subr.mxu0 0.0
        %1412 = vmatpush1.msra.mxu0 0.0
        %1413 = vmatprep.subr.mxu0 0.0
        %1414 = vmatpush1.msra.mxu0 0.0
        %1415 = vmatprep.subr.mxu0 0.0
        %1416 = vmatpush1.msra.mxu0 0.0
        %1417 = vmatprep.subr.mxu0 0.0
        %1418 = vmatpush1.msra.mxu0 0.0
        %1419 = vmatprep.subr.mxu0 0.0
        %1420 = vmatpush1.msra.mxu0 0.0
        %1421 = vmatprep.subr.mxu0 0.0
        %1422 = vmatpush1.msra.mxu0 0.0
        %1423 = vmatprep.subr.mxu0 0.0
        %1424 = vmatpush1.msra.mxu0 0.0
        %1425 = vmatprep.subr.mxu0 0.0
        %1426 = vmatpush1.msra.mxu0 0.0
        %1427 = vmatprep.subr.mxu0 0.0
        %1428 = vmatpush1.msra.mxu0 0.0
        %1429 = vmatprep.subr.mxu0 0.0
        %1430 = vmatpush1.msra.mxu0 0.0
        %1431 = vmatprep.mubr.f32.mxu0 0.0
        %1432 = vmatmul.mubr.f32.gmra.mrb[0].mxu0 %v1365
        %v1433 = vpop.f32.mrb[0].mxu0
        %v1434 = vadd.f32 0.0, %v1433
        %v1435 = vpop.f32.mrb[0].mxu0
        %1436 = vdwg.mxu0
        %v1437 = vrcp.pop %v1359
        %v1438 = vmul.f32 %v739, %v1437
        %v1439 = vmul.f32 %v1434, %v1438
        %1440 = vrot.lane.b32.xlu0 %v418, 104
        %v1441 = vpop.permute.xlu0 %1440
        %v1443 = vadd.f32 %v1439, %v1441
        %1445 = vrot.lane.b32.xlu0 %v1443, 24
        %v1446 = vpop.permute.xlu0 %1445
        %vm1448 = vcmask 261312
        %1449 = vst.msk [vmem:[#allocation5] sm:$0xff] %vm1448, %v1446
        %v1450 = vld [vmem:[#allocation5] sm:$0xff]
        %1451 = vst.msk [vmem:[%s417] sm:$0xff] %vm643, %v1450
        %s1452 = sand.u32 %s231, 1
        %s1453 = scalar_lea.sflag [#allocation8], %s1452
        %s1454 = sand.u32 %s231, 1
        %s1455 = smul.addr %s1454, 8
        %s1456 = scalar_lea.vmem [#allocation15], %s1455
        // Predicated region
        $region77: #{tpu_custom_call.1} parent=51 // pred_check
          %p1457 = pneg %p241
        $region78: #{tpu_custom_call.1} parent=51 // pred_check_branch
          %1459 = sbr.rel (%p1457) target = $region80
        $region79: #{tpu_custom_call.1} parent=51 // pred_region
          %s1461 = ssub.s32 128, 128
          %1462 = vsyncadd %s1453, %s1461
          %s1463 = sadd.s32 %s34, %s33
          %s1464 = smul.addr %s1463, 128
          %s1465 = scalar_lea.hbm %s8, %s1464
          %s1467 = sshll.u32 %s1456, 4
          %s1468 = int_to_ptr.vmem [resolvable:$true] %s1467
          %1470 = dma.vmem_to_hbm [thread:$0]  %s1468, 128, %s1465, %s1453
        $region80: #{tpu_custom_call.1} parent=51 // pred_fallthru
          _
      $region52: #{tpu_custom_call.1} parent=5 // pred_fallthru
        _
      %p1471 = scmp.le.s32.totalorder 2, %s24
      // Predicated region
      $region81: #{tpu_custom_call.1} parent=5 // pred_check
        %p1472 = pneg %p1471
      $region82: #{tpu_custom_call.1} parent=5 // pred_check_branch
        %1474 = sbr.rel (%p1472) target = $region84
      $region83: #{tpu_custom_call.1} parent=5 // pred_region
        %s1475 = ssub.s32 %s24, 2
        // Predicated region
        $region85: #{tpu_custom_call.1} parent=83 // pred_check
          %p1476 = pneg %p247
        $region86: #{tpu_custom_call.1} parent=83 // pred_check_branch
          %1478 = sbr.rel (%p1476) target = $region88
        $region87: #{tpu_custom_call.1} parent=83 // pred_region
          %s1479 = sand.u32 %s232, 1
          %s1480 = scalar_lea.sflag [#allocation8], %s1479
          %s1481 = sand.u32 %s232, 1
          %s1482 = smul.addr %s1481, 8
          %s1483 = scalar_lea.vmem [#allocation15], %s1482
          %1484 = dma.done %s1480, 128
        $region88: #{tpu_custom_call.1} parent=83 // pred_fallthru
          _
      $region84: #{tpu_custom_call.1} parent=5 // pred_fallthru
        _
    $region6: #{tpu_custom_call.1} parent=1 // loop_footer
      %s28 = sadd.s32 1, %s24
    $region7: #{tpu_custom_call.1} parent=1 // loop_footer_branch
      %23 = sbr.rel target = $region3
    $region8: #{tpu_custom_call.1} parent=1 // loop_exit
      _
    %1485 = vsyncpa [#allocation7], 1
    %s1486 = scalar_lea.sflag [#allocation7], 1
    %1487 = vsyncpa %s1486, 1
    %1488 = vsyncpa [#allocation10], 1
    %s1489 = scalar_lea.sflag [#allocation10], 1
    %1490 = vsyncpa %s1489, 1
    %1491 = vsyncpa [#allocation13], 1
    %1492 = vsyncpa [#allocation8], 1
    %s1493 = scalar_lea.sflag [#allocation8], 1
    %1494 = vsyncpa %s1493, 1

</llo_original>
